<compile_context>
chip_gen: v6e
topology: v6e:2x2x1
jax: 0.10.0
libtpu: 0.0.40
codegen_flags: <defaults>
</compile_context>

<pallas_src>
import jax
import jax.numpy as jnp
from jax import lax
from jax.experimental import pallas as pl
from jax.experimental.pallas import tpu as pltpu


def _leaky(x):
    return jnp.where(x > 0, x, 0.2 * x)


# ---------------------------------------------------------------------------
# Fused Pallas kernel (channel-major layout: (C, H*W), HW on lanes)
# ---------------------------------------------------------------------------
def _make_block_kernel(H, W, learnable_sc):
    HW = H * W

    def kernel(h_ref,
               g0_ref, b0_ref, g1_ref, b1_ref,     # fuse1 gammas/betas : (in_ch, 1)
               g2_ref, b2_ref, g3_ref, b3_ref,     # fuse2 gammas/betas : (out_ch, 1)
               w1_ref, c1b_ref,                    # conv1 : (out_ch, 9*in_ch) bf16, (out_ch, 1)
               w2_ref, c2b_ref,                    # conv2 : (out_ch, 9*out_ch) bf16, (out_ch, 1)
               *rest):
        if learnable_sc:
            wsc_ref, bsc_ref, out_ref = rest       # shortcut 1x1 : (out_ch, in_ch) bf16, (out_ch, 1)
        else:
            (out_ref,) = rest                      # identity shortcut: no extra operands

        x = h_ref[0]                               # (Cin, HW) f32, lane-dense

        # Boundary masks, hoisted once per grid step (2 vertical + 2 horizontal).
        pos = lax.broadcasted_iota(jnp.int32, (1, HW), 1)
        col = pos % W
        v_up = pos >= W                            # row - 1 in range
        v_dn = pos < HW - W                        # row + 1 in range
        h_lf = col >= 1                            # col - 1 in range
        h_rt = col < W - 1                         # col + 1 in range
        masks = []
        for k in range(9):
            dy, dx = k // 3 - 1, k % 3 - 1
            m = None
            if dy == -1:
                m = v_up
            elif dy == 1:
                m = v_dn
            if dx == -1:
                m = h_lf if m is None else (m & h_lf)
            elif dx == 1:
                m = h_rt if m is None else (m & h_rt)
            masks.append(m)                        # None for the center tap

        def conv3x3(t, w_ref, b_ref):
            # im2col: 9 rolled + masked taps stacked on sublanes -> one bf16 MXU matmul.
            taps = []
            for k in range(9):
                dy, dx = k // 3 - 1, k % 3 - 1
                s = dy * W + dx                    # tap at position p reads t[:, p + s]
                tap = t if s == 0 else pltpu.roll(t, (-s) % HW, axis=1)
                if masks[k] is not None:
                    tap = jnp.where(masks[k], tap, 0.0)   # zero out wrapped / padded pixels
                taps.append(tap)
            cols = jnp.concatenate(taps, axis=0).astype(jnp.bfloat16)   # (9*C, HW)
            acc = jnp.dot(w_ref[...], cols, preferred_element_type=jnp.float32)
            return acc + b_ref[...]                # bias added once, post-matmul

        # Residual branch (elementwise kept in f32 for v5e-friendly VPU path).
        t = _leaky(x * g0_ref[0] + b0_ref[0])      # fuse1.affine0 + LeakyReLU
        t = _leaky(t * g1_ref[0] + b1_ref[0])      # fuse1.affine1 + LeakyReLU
        t = conv3x3(t, w1_ref, c1b_ref)            # c1 : (out_ch, HW)
        t = _leaky(t * g2_ref[0] + b2_ref[0])      # fuse2.affine0 + LeakyReLU
        t = _leaky(t * g3_ref[0] + b3_ref[0])      # fuse2.affine1 + LeakyReLU
        t = conv3x3(t, w2_ref, c2b_ref)            # c2 : (out_ch, HW)

        # Shortcut: fused 1x1 conv, or exact identity (trace-time specialization).
        # Kept in f32: K = in_ch is negligible MXU work and x has the widest dynamic
        # range; also keeps identity vs. learnable shortcut numerically symmetric.
        if learnable_sc:
            sc = jnp.dot(wsc_ref[...].astype(jnp.float32), x,
                         preferred_element_type=jnp.float32) + bsc_ref[...]
        else:
            sc = x

        out_ref[0] = (sc + t).astype(out_ref.dtype)    # lane-dense (out_ch, HW) store

    return kernel


# ---------------------------------------------------------------------------
# Parameters (deterministic synthetic init; shapes follow the PyTorch module)
# ---------------------------------------------------------------------------
def init_params(key, cond_dim, in_ch, out_ch):
    ks = iter(jax.random.split(key, 40))

    def dense(i, o):
        return (0.2 * jax.random.normal(next(ks), (i, o), jnp.float32),
                0.1 * jax.random.normal(next(ks), (o,), jnp.float32))

    def affine(nf):
        gw1, gb1 = dense(cond_dim, nf)
        gw2, gb2 = dense(nf, nf)
        bw1, bb1 = dense(cond_dim, nf)
        bw2, bb2 = dense(nf, nf)
        return {'gamma': (gw1, gb1, gw2, gb2), 'beta': (bw1, bb1, bw2, bb2)}

    p = {
        'fuse1_a0': affine(in_ch), 'fuse1_a1': affine(in_ch),
        'fuse2_a0': affine(out_ch), 'fuse2_a1': affine(out_ch),
        'c1_w': 0.2 * jax.random.normal(next(ks), (3, 3, in_ch, out_ch), jnp.float32),
        'c1_b': 0.1 * jax.random.normal(next(ks), (out_ch,), jnp.float32),
        'c2_w': 0.2 * jax.random.normal(next(ks), (3, 3, out_ch, out_ch), jnp.float32),
        'c2_b': 0.1 * jax.random.normal(next(ks), (out_ch,), jnp.float32),
        'csc_w': 0.2 * jax.random.normal(next(ks), (in_ch, out_ch), jnp.float32),
        'csc_b': 0.1 * jax.random.normal(next(ks), (out_ch,), jnp.float32),
    }
    return p


# ---------------------------------------------------------------------------
# Glue: nearest resize + tiny conditioning MLPs, then the fused Pallas kernel.
# ---------------------------------------------------------------------------
def _mlp(p, y):
    return jnp.maximum(y @ p[0] + p[1], 0.0) @ p[2] + p[3]


def _affine_gb(p, y):
    return _mlp(p['gamma'], y), _mlp(p['beta'], y)


def adapter_block_forward(h_nchw, y, params, imsize):
    B, in_ch, Hin, Win = h_nchw.shape
    out_ch = params['c1_w'].shape[-1]
    H = W = imsize
    HW = H * W
    learnable_sc = in_ch != out_ch

    # Nearest-neighbour resize to (imsize, imsize).  Staying NCHW means the flatten to
    # (B, C, H*W) below is a free reshape — no HBM transpose copy before/after kernel.
    iy = jnp.floor(jnp.arange(H) * (Hin / H)).astype(jnp.int32)
    ix = jnp.floor(jnp.arange(W) * (Win / W)).astype(jnp.int32)
    h_up = h_nchw[:, :, iy, :][:, :, :, ix]                    # (B, Cin, H, W)
    x_flat = h_up.reshape(B, in_ch, HW)

    # Conditioning MLPs (tiny per-sample vectors) -> per-channel gamma/beta columns.
    g0, b0 = _affine_gb(params['fuse1_a0'], y)
    g1, b1 = _affine_gb(params['fuse1_a1'], y)
    g2, b2 = _affine_gb(params['fuse2_a0'], y)
    g3, b3 = _affine_gb(params['fuse2_a1'], y)

    def vcol(a):                       # (B, C) -> (B, C, 1): broadcasts along lanes
        return a.reshape(B, -1, 1)

    def prep_w(w, cin, cout):          # (3,3,cin,cout) -> (cout, 9*cin), k-major, bf16
        return jnp.transpose(w.reshape(9, cin, cout), (2, 0, 1)).reshape(
            cout, 9 * cin).astype(jnp.bfloat16)

    w1 = prep_w(params['c1_w'], in_ch, out_ch)
    w2 = prep_w(params['c2_w'], out_ch, out_ch)
    c1b = params['c1_b'].reshape(out_ch, 1)
    c2b = params['c2_b'].reshape(out_ch, 1)

    kernel = _make_block_kernel(H, W, learnable_sc)

    def per_batch(tail):
        zeros = (0,) * len(tail)
        return pl.BlockSpec((1,) + tuple(tail), lambda b, z=zeros: (b,) + z)

    def shared(shape):
        zeros = (0,) * len(shape)
        return pl.BlockSpec(tuple(shape), lambda b, z=zeros: z)

    in_specs = [
        per_batch((in_ch, HW)),                                     # h
        per_batch((in_ch, 1)), per_batch((in_ch, 1)),               # g0, b0
        per_batch((in_ch, 1)), per_batch((in_ch, 1)),               # g1, b1
        per_batch((out_ch, 1)), per_batch((out_ch, 1)),             # g2, b2
        per_batch((out_ch, 1)), per_batch((out_ch, 1)),             # g3, b3
        shared((out_ch, 9 * in_ch)), shared((out_ch, 1)),           # conv1 w, b
        shared((out_ch, 9 * out_ch)), shared((out_ch, 1)),          # conv2 w, b
    ]
    operands = [x_flat, vcol(g0), vcol(b0), vcol(g1), vcol(b1),
                vcol(g2), vcol(b2), vcol(g3), vcol(b3),
                w1, c1b, w2, c2b]
    if learnable_sc:
        in_specs += [shared((out_ch, in_ch)), shared((out_ch, 1))]
        operands += [params['csc_w'].T.astype(jnp.bfloat16),
                     params['csc_b'].reshape(out_ch, 1)]

    out = pl.pallas_call(
        kernel,
        out_shape=jax.ShapeDtypeStruct((B, out_ch, HW), jnp.float32),
        grid_spec=pltpu.PrefetchScalarGridSpec(
            num_scalar_prefetch=0,
            grid=(B,),
            in_specs=in_specs,
            out_specs=per_batch((out_ch, HW)),
        ),
        compiler_params=pltpu.CompilerParams(
            dimension_semantics=("parallel",),
            vmem_limit_bytes=48 * 1024 * 1024),     # explicit budget: fits v7x 64 MiB
    )(*operands)

    return out.reshape(B, out_ch, H, W)             # already NCHW: free reshape


# ---------------------------------------------------------------------------
# Pure-JAX reference (for validation only)
# ---------------------------------------------------------------------------
def adapter_block_reference(h_nchw, y, params, imsize):
    B, in_ch, Hin, Win = h_nchw.shape
    iy = jnp.floor(jnp.arange(imsize) * (Hin / imsize)).astype(jnp.int32)
    ix = jnp.floor(jnp.arange(imsize) * (Win / imsize)).astype(jnp.int32)
    h_up = h_nchw[:, :, iy, :][:, :, :, ix]
    x = jnp.transpose(h_up, (0, 2, 3, 1))                      # NHWC

    def affine(p, xx):
        g, b = _affine_gb(p, y)
        return xx * g[:, None, None, :] + b[:, None, None, :]

    def dfblk(p0, p1, xx):
        return _leaky(affine(p1, _leaky(affine(p0, xx))))

    def conv(xx, w, b):
        o = lax.conv_general_dilated(xx, w, (1, 1), 'SAME',
                                     dimension_numbers=('NHWC', 'HWIO', 'NHWC'))
        return o + b

    t = dfblk(params['fuse1_a0'], params['fuse1_a1'], x)
    t = conv(t, params['c1_w'], params['c1_b'])
    t = dfblk(params['fuse2_a0'], params['fuse2_a1'], t)
    t = conv(t, params['c2_w'], params['c2_b'])
    if in_ch != params['c1_w'].shape[-1]:
        sc = jnp.einsum('bhwc,cd->bhwd', x, params['csc_w']) + params['csc_b']
    else:
        sc = x
    return jnp.transpose(sc + t, (0, 3, 1, 2))


if __name__ == "__main__":
    key = jax.random.PRNGKey(0)
    B, cond_dim, in_ch, out_ch = 2, 16, 4, 8
    Hin = Win = 8
    imsize = 16

    kp, kh, ky = jax.random.split(key, 3)
    params = init_params(kp, cond_dim, in_ch, out_ch)
    h = jax.random.normal(kh, (B, in_ch, Hin, Win), jnp.float32)
    y = jax.random.normal(ky, (B, cond_dim), jnp.float32)

    out = jax.block_until_ready(adapter_block_forward(h, y, params, imsize))
    ref = jax.block_until_ready(adapter_block_reference(h, y, params, imsize))

    assert out.shape == (B, out_ch, imsize, imsize)
    err = float(jnp.max(jnp.abs(out - ref)))
    assert err < 5e-2, f"max abs error {err}"
    print("KERNEL_OK")
</pallas_src>

<mosaic_0001>
module attributes {stable_mosaic.version = 11 : i64} {
  func.func @kernel(%arg0: i32, %arg1: memref<1x4x256xf32, #tpu.memory_space<vmem>>, %arg2: memref<1x4x1xf32, #tpu.memory_space<vmem>>, %arg3: memref<1x4x1xf32, #tpu.memory_space<vmem>>, %arg4: memref<1x4x1xf32, #tpu.memory_space<vmem>>, %arg5: memref<1x4x1xf32, #tpu.memory_space<vmem>>, %arg6: memref<1x8x1xf32, #tpu.memory_space<vmem>>, %arg7: memref<1x8x1xf32, #tpu.memory_space<vmem>>, %arg8: memref<1x8x1xf32, #tpu.memory_space<vmem>>, %arg9: memref<1x8x1xf32, #tpu.memory_space<vmem>>, %arg10: memref<8x36xbf16, #tpu.memory_space<vmem>>, %arg11: memref<8x1xf32, #tpu.memory_space<vmem>>, %arg12: memref<8x72xbf16, #tpu.memory_space<vmem>>, %arg13: memref<8x1xf32, #tpu.memory_space<vmem>>, %arg14: memref<8x4xbf16, #tpu.memory_space<vmem>>, %arg15: memref<8x1xf32, #tpu.memory_space<vmem>>, %arg16: memref<1x8x256xf32, #tpu.memory_space<vmem>>) attributes {dimension_semantics = [#tpu.dimension_semantics<parallel>], iteration_bounds = array<i64: 2>, scalar_prefetch = 0 : i64, scratch_operands = 0 : i64, tpu.core_type = #tpu.core_type<tc>, window_params = [{transform_indices = @transform_0, window_bounds = array<i64: 1, 4, 256>}, {transform_indices = @transform_1, window_bounds = array<i64: 1, 4, 1>}, {transform_indices = @transform_2, window_bounds = array<i64: 1, 4, 1>}, {transform_indices = @transform_3, window_bounds = array<i64: 1, 4, 1>}, {transform_indices = @transform_4, window_bounds = array<i64: 1, 4, 1>}, {transform_indices = @transform_5, window_bounds = array<i64: 1, 8, 1>}, {transform_indices = @transform_6, window_bounds = array<i64: 1, 8, 1>}, {transform_indices = @transform_7, window_bounds = array<i64: 1, 8, 1>}, {transform_indices = @transform_8, window_bounds = array<i64: 1, 8, 1>}, {pipeline_mode = #tpu.pipeline_mode<synchronous>, transform_indices = @transform_9, window_bounds = array<i64: 8, 36>}, {pipeline_mode = #tpu.pipeline_mode<synchronous>, transform_indices = @transform_10, window_bounds = array<i64: 8, 1>}, {pipeline_mode = #tpu.pipeline_mode<synchronous>, transform_indices = @transform_11, window_bounds = array<i64: 8, 72>}, {pipeline_mode = #tpu.pipeline_mode<synchronous>, transform_indices = @transform_12, window_bounds = array<i64: 8, 1>}, {pipeline_mode = #tpu.pipeline_mode<synchronous>, transform_indices = @transform_13, window_bounds = array<i64: 8, 4>}, {pipeline_mode = #tpu.pipeline_mode<synchronous>, transform_indices = @transform_14, window_bounds = array<i64: 8, 1>}, {transform_indices = @transform_15, window_bounds = array<i64: 1, 8, 256>}]} {
    %c0 = arith.constant 0 : index
    %c0_0 = arith.constant 0 : index
    %c0_1 = arith.constant 0 : index
    %0 = vector.load %arg1[%c0, %c0_0, %c0_1] : memref<1x4x256xf32, #tpu.memory_space<vmem>>, vector<1x4x256xf32>
    %1 = vector.shape_cast %0 : vector<1x4x256xf32> to vector<4x256xf32>
    %2 = tpu.iota {dimensions = array<i32: 1>} : vector<1x256xi32>
    %c16_i32 = arith.constant 16 : i32
    %c0_i32 = arith.constant 0 : i32
    %3 = arith.cmpi eq, %c16_i32, %c0_i32 : i32
    %c1_i32 = arith.constant 1 : i32
    %4 = arith.select %3, %c1_i32, %c16_i32 : i32
    %5 = vector.broadcast %4 : i32 to vector<1x256xi32>
    %6 = arith.remsi %2, %5 : vector<1x256xi32>
    %c0_i32_2 = arith.constant 0 : i32
    %7 = vector.broadcast %c0_i32_2 : i32 to vector<1x256xi32>
    %8 = arith.cmpi ne, %6, %7 : vector<1x256xi32>
    %c0_i32_3 = arith.constant 0 : i32
    %9 = vector.broadcast %c0_i32_3 : i32 to vector<1x256xi32>
    %10 = arith.cmpi slt, %6, %9 : vector<1x256xi32>
    %c0_i32_4 = arith.constant 0 : i32
    %11 = arith.cmpi slt, %4, %c0_i32_4 : i32
    %12 = vector.broadcast %11 : i1 to vector<1x256xi1>
    %13 = vector.broadcast %12 : vector<1x256xi1> to vector<1x256xi1>
    %14 = arith.xori %10, %13 : vector<1x256xi1>
    %15 = arith.andi %14, %8 : vector<1x256xi1>
    %16 = vector.broadcast %4 : i32 to vector<1x256xi32>
    %17 = arith.addi %6, %16 : vector<1x256xi32>
    %18 = arith.select %15, %17, %6 : vector<1x256xi1>, vector<1x256xi32>
    %c16_i32_5 = arith.constant 16 : i32
    %19 = vector.broadcast %c16_i32_5 : i32 to vector<1x256xi32>
    %20 = arith.cmpi sge, %2, %19 : vector<1x256xi32>
    %c240_i32 = arith.constant 240 : i32
    %21 = vector.broadcast %c240_i32 : i32 to vector<1x256xi32>
    %22 = arith.cmpi slt, %2, %21 : vector<1x256xi32>
    %c1_i32_6 = arith.constant 1 : i32
    %23 = vector.broadcast %c1_i32_6 : i32 to vector<1x256xi32>
    %24 = arith.cmpi sge, %18, %23 : vector<1x256xi32>
    %c15_i32 = arith.constant 15 : i32
    %25 = vector.broadcast %c15_i32 : i32 to vector<1x256xi32>
    %26 = arith.cmpi slt, %18, %25 : vector<1x256xi32>
    %27 = arith.andi %20, %24 : vector<1x256xi1>
    %28 = arith.andi %20, %26 : vector<1x256xi1>
    %29 = arith.andi %22, %24 : vector<1x256xi1>
    %30 = arith.andi %22, %26 : vector<1x256xi1>
    %c0_7 = arith.constant 0 : index
    %c0_8 = arith.constant 0 : index
    %c0_9 = arith.constant 0 : index
    %31 = vector.load %arg2[%c0_7, %c0_8, %c0_9] : memref<1x4x1xf32, #tpu.memory_space<vmem>>, vector<1x4x1xf32>
    %32 = vector.shape_cast %31 : vector<1x4x1xf32> to vector<4x1xf32>
    %33 = vector.broadcast %32 : vector<4x1xf32> to vector<4x256xf32>
    %34 = arith.mulf %1, %33 : vector<4x256xf32>
    %c0_10 = arith.constant 0 : index
    %c0_11 = arith.constant 0 : index
    %c0_12 = arith.constant 0 : index
    %35 = vector.load %arg3[%c0_10, %c0_11, %c0_12] : memref<1x4x1xf32, #tpu.memory_space<vmem>>, vector<1x4x1xf32>
    %36 = vector.shape_cast %35 : vector<1x4x1xf32> to vector<4x1xf32>
    %37 = vector.broadcast %36 : vector<4x1xf32> to vector<4x256xf32>
    %38 = arith.addf %34, %37 : vector<4x256xf32>
    %cst = arith.constant 0.000000e+00 : f32
    %39 = vector.broadcast %cst : f32 to vector<4x256xf32>
    %40 = arith.cmpf ogt, %38, %39 : vector<4x256xf32>
    %cst_13 = arith.constant 2.000000e-01 : f32
    %41 = vector.broadcast %cst_13 : f32 to vector<4x256xf32>
    %42 = arith.mulf %41, %38 : vector<4x256xf32>
    %43 = arith.select %40, %38, %42 : vector<4x256xi1>, vector<4x256xf32>
    %c0_14 = arith.constant 0 : index
    %c0_15 = arith.constant 0 : index
    %c0_16 = arith.constant 0 : index
    %44 = vector.load %arg4[%c0_14, %c0_15, %c0_16] : memref<1x4x1xf32, #tpu.memory_space<vmem>>, vector<1x4x1xf32>
    %45 = vector.shape_cast %44 : vector<1x4x1xf32> to vector<4x1xf32>
    %46 = vector.broadcast %45 : vector<4x1xf32> to vector<4x256xf32>
    %47 = arith.mulf %43, %46 : vector<4x256xf32>
    %c0_17 = arith.constant 0 : index
    %c0_18 = arith.constant 0 : index
    %c0_19 = arith.constant 0 : index
    %48 = vector.load %arg5[%c0_17, %c0_18, %c0_19] : memref<1x4x1xf32, #tpu.memory_space<vmem>>, vector<1x4x1xf32>
    %49 = vector.shape_cast %48 : vector<1x4x1xf32> to vector<4x1xf32>
    %50 = vector.broadcast %49 : vector<4x1xf32> to vector<4x256xf32>
    %51 = arith.addf %47, %50 : vector<4x256xf32>
    %cst_20 = arith.constant 0.000000e+00 : f32
    %52 = vector.broadcast %cst_20 : f32 to vector<4x256xf32>
    %53 = arith.cmpf ogt, %51, %52 : vector<4x256xf32>
    %cst_21 = arith.constant 2.000000e-01 : f32
    %54 = vector.broadcast %cst_21 : f32 to vector<4x256xf32>
    %55 = arith.mulf %54, %51 : vector<4x256xf32>
    %56 = arith.select %53, %51, %55 : vector<4x256xi1>, vector<4x256xf32>
    %c17_i32 = arith.constant 17 : i32
    %57 = tpu.dynamic_rotate %56 by %c17_i32 dim 1 : vector<4x256xf32>, i32 -> vector<4x256xf32>
    %cst_22 = arith.constant 0.000000e+00 : f32
    %58 = vector.shape_cast %27 : vector<1x256xi1> to vector<1x256xi1>
    %59 = vector.broadcast %58 : vector<1x256xi1> to vector<4x256xi1>
    %60 = vector.broadcast %cst_22 : f32 to vector<4x256xf32>
    %61 = arith.select %59, %57, %60 : vector<4x256xi1>, vector<4x256xf32>
    %c16_i32_23 = arith.constant 16 : i32
    %62 = tpu.dynamic_rotate %56 by %c16_i32_23 dim 1 : vector<4x256xf32>, i32 -> vector<4x256xf32>
    %cst_24 = arith.constant 0.000000e+00 : f32
    %63 = vector.shape_cast %20 : vector<1x256xi1> to vector<1x256xi1>
    %64 = vector.broadcast %63 : vector<1x256xi1> to vector<4x256xi1>
    %65 = vector.broadcast %cst_24 : f32 to vector<4x256xf32>
    %66 = arith.select %64, %62, %65 : vector<4x256xi1>, vector<4x256xf32>
    %c15_i32_25 = arith.constant 15 : i32
    %67 = tpu.dynamic_rotate %56 by %c15_i32_25 dim 1 : vector<4x256xf32>, i32 -> vector<4x256xf32>
    %cst_26 = arith.constant 0.000000e+00 : f32
    %68 = vector.shape_cast %28 : vector<1x256xi1> to vector<1x256xi1>
    %69 = vector.broadcast %68 : vector<1x256xi1> to vector<4x256xi1>
    %70 = vector.broadcast %cst_26 : f32 to vector<4x256xf32>
    %71 = arith.select %69, %67, %70 : vector<4x256xi1>, vector<4x256xf32>
    %c1_i32_27 = arith.constant 1 : i32
    %72 = tpu.dynamic_rotate %56 by %c1_i32_27 dim 1 : vector<4x256xf32>, i32 -> vector<4x256xf32>
    %cst_28 = arith.constant 0.000000e+00 : f32
    %73 = vector.shape_cast %24 : vector<1x256xi1> to vector<1x256xi1>
    %74 = vector.broadcast %73 : vector<1x256xi1> to vector<4x256xi1>
    %75 = vector.broadcast %cst_28 : f32 to vector<4x256xf32>
    %76 = arith.select %74, %72, %75 : vector<4x256xi1>, vector<4x256xf32>
    %c255_i32 = arith.constant 255 : i32
    %77 = tpu.dynamic_rotate %56 by %c255_i32 dim 1 : vector<4x256xf32>, i32 -> vector<4x256xf32>
    %cst_29 = arith.constant 0.000000e+00 : f32
    %78 = vector.shape_cast %26 : vector<1x256xi1> to vector<1x256xi1>
    %79 = vector.broadcast %78 : vector<1x256xi1> to vector<4x256xi1>
    %80 = vector.broadcast %cst_29 : f32 to vector<4x256xf32>
    %81 = arith.select %79, %77, %80 : vector<4x256xi1>, vector<4x256xf32>
    %c241_i32 = arith.constant 241 : i32
    %82 = tpu.dynamic_rotate %56 by %c241_i32 dim 1 : vector<4x256xf32>, i32 -> vector<4x256xf32>
    %cst_30 = arith.constant 0.000000e+00 : f32
    %83 = vector.shape_cast %29 : vector<1x256xi1> to vector<1x256xi1>
    %84 = vector.broadcast %83 : vector<1x256xi1> to vector<4x256xi1>
    %85 = vector.broadcast %cst_30 : f32 to vector<4x256xf32>
    %86 = arith.select %84, %82, %85 : vector<4x256xi1>, vector<4x256xf32>
    %c240_i32_31 = arith.constant 240 : i32
    %87 = tpu.dynamic_rotate %56 by %c240_i32_31 dim 1 : vector<4x256xf32>, i32 -> vector<4x256xf32>
    %cst_32 = arith.constant 0.000000e+00 : f32
    %88 = vector.shape_cast %22 : vector<1x256xi1> to vector<1x256xi1>
    %89 = vector.broadcast %88 : vector<1x256xi1> to vector<4x256xi1>
    %90 = vector.broadcast %cst_32 : f32 to vector<4x256xf32>
    %91 = arith.select %89, %87, %90 : vector<4x256xi1>, vector<4x256xf32>
    %c239_i32 = arith.constant 239 : i32
    %92 = tpu.dynamic_rotate %56 by %c239_i32 dim 1 : vector<4x256xf32>, i32 -> vector<4x256xf32>
    %cst_33 = arith.constant 0.000000e+00 : f32
    %93 = vector.shape_cast %30 : vector<1x256xi1> to vector<1x256xi1>
    %94 = vector.broadcast %93 : vector<1x256xi1> to vector<4x256xi1>
    %95 = vector.broadcast %cst_33 : f32 to vector<4x256xf32>
    %96 = arith.select %94, %92, %95 : vector<4x256xi1>, vector<4x256xf32>
    %97 = tpu.concatenate %61, %66, %71, %76, %56, %81, %86, %91, %96 in 0 : vector<4x256xf32>, vector<4x256xf32>, vector<4x256xf32>, vector<4x256xf32>, vector<4x256xf32>, vector<4x256xf32>, vector<4x256xf32>, vector<4x256xf32>, vector<4x256xf32> -> vector<36x256xf32>
    %98 = arith.truncf %97 : vector<36x256xf32> to vector<36x256xbf16>
    %c0_34 = arith.constant 0 : index
    %c0_35 = arith.constant 0 : index
    %99 = vector.load %arg10[%c0_34, %c0_35] : memref<8x36xbf16, #tpu.memory_space<vmem>>, vector<8x36xbf16>
    %cst_36 = arith.constant dense<0.000000e+00> : vector<8x256xf32>
    %100 = tpu.matmul %99, %98, %cst_36 {dimension_numbers = #tpu.dot_dimension_numbers<[1], [0], [0], [1], [0, 0, 1, 1], [], []>} : vector<8x36xbf16>, vector<36x256xbf16>, vector<8x256xf32> -> vector<8x256xf32>
    %c0_37 = arith.constant 0 : index
    %c0_38 = arith.constant 0 : index
    %101 = vector.load %arg11[%c0_37, %c0_38] : memref<8x1xf32, #tpu.memory_space<vmem>>, vector<8x1xf32>
    %102 = vector.broadcast %101 : vector<8x1xf32> to vector<8x256xf32>
    %103 = arith.addf %100, %102 : vector<8x256xf32>
    %c0_39 = arith.constant 0 : index
    %c0_40 = arith.constant 0 : index
    %c0_41 = arith.constant 0 : index
    %104 = vector.load %arg6[%c0_39, %c0_40, %c0_41] : memref<1x8x1xf32, #tpu.memory_space<vmem>>, vector<1x8x1xf32>
    %105 = vector.shape_cast %104 : vector<1x8x1xf32> to vector<8x1xf32>
    %106 = vector.broadcast %105 : vector<8x1xf32> to vector<8x256xf32>
    %107 = arith.mulf %103, %106 : vector<8x256xf32>
    %c0_42 = arith.constant 0 : index
    %c0_43 = arith.constant 0 : index
    %c0_44 = arith.constant 0 : index
    %108 = vector.load %arg7[%c0_42, %c0_43, %c0_44] : memref<1x8x1xf32, #tpu.memory_space<vmem>>, vector<1x8x1xf32>
    %109 = vector.shape_cast %108 : vector<1x8x1xf32> to vector<8x1xf32>
    %110 = vector.broadcast %109 : vector<8x1xf32> to vector<8x256xf32>
    %111 = arith.addf %107, %110 : vector<8x256xf32>
    %cst_45 = arith.constant 0.000000e+00 : f32
    %112 = vector.broadcast %cst_45 : f32 to vector<8x256xf32>
    %113 = arith.cmpf ogt, %111, %112 : vector<8x256xf32>
    %cst_46 = arith.constant 2.000000e-01 : f32
    %114 = vector.broadcast %cst_46 : f32 to vector<8x256xf32>
    %115 = arith.mulf %114, %111 : vector<8x256xf32>
    %116 = arith.select %113, %111, %115 : vector<8x256xi1>, vector<8x256xf32>
    %c0_47 = arith.constant 0 : index
    %c0_48 = arith.constant 0 : index
    %c0_49 = arith.constant 0 : index
    %117 = vector.load %arg8[%c0_47, %c0_48, %c0_49] : memref<1x8x1xf32, #tpu.memory_space<vmem>>, vector<1x8x1xf32>
    %118 = vector.shape_cast %117 : vector<1x8x1xf32> to vector<8x1xf32>
    %119 = vector.broadcast %118 : vector<8x1xf32> to vector<8x256xf32>
    %120 = arith.mulf %116, %119 : vector<8x256xf32>
    %c0_50 = arith.constant 0 : index
    %c0_51 = arith.constant 0 : index
    %c0_52 = arith.constant 0 : index
    %121 = vector.load %arg9[%c0_50, %c0_51, %c0_52] : memref<1x8x1xf32, #tpu.memory_space<vmem>>, vector<1x8x1xf32>
    %122 = vector.shape_cast %121 : vector<1x8x1xf32> to vector<8x1xf32>
    %123 = vector.broadcast %122 : vector<8x1xf32> to vector<8x256xf32>
    %124 = arith.addf %120, %123 : vector<8x256xf32>
    %cst_53 = arith.constant 0.000000e+00 : f32
    %125 = vector.broadcast %cst_53 : f32 to vector<8x256xf32>
    %126 = arith.cmpf ogt, %124, %125 : vector<8x256xf32>
    %cst_54 = arith.constant 2.000000e-01 : f32
    %127 = vector.broadcast %cst_54 : f32 to vector<8x256xf32>
    %128 = arith.mulf %127, %124 : vector<8x256xf32>
    %129 = arith.select %126, %124, %128 : vector<8x256xi1>, vector<8x256xf32>
    %c17_i32_55 = arith.constant 17 : i32
    %130 = tpu.dynamic_rotate %129 by %c17_i32_55 dim 1 : vector<8x256xf32>, i32 -> vector<8x256xf32>
    %cst_56 = arith.constant 0.000000e+00 : f32
    %131 = vector.shape_cast %27 : vector<1x256xi1> to vector<1x256xi1>
    %132 = vector.broadcast %131 : vector<1x256xi1> to vector<8x256xi1>
    %133 = vector.broadcast %cst_56 : f32 to vector<8x256xf32>
    %134 = arith.select %132, %130, %133 : vector<8x256xi1>, vector<8x256xf32>
    %c16_i32_57 = arith.constant 16 : i32
    %135 = tpu.dynamic_rotate %129 by %c16_i32_57 dim 1 : vector<8x256xf32>, i32 -> vector<8x256xf32>
    %cst_58 = arith.constant 0.000000e+00 : f32
    %136 = vector.shape_cast %20 : vector<1x256xi1> to vector<1x256xi1>
    %137 = vector.broadcast %136 : vector<1x256xi1> to vector<8x256xi1>
    %138 = vector.broadcast %cst_58 : f32 to vector<8x256xf32>
    %139 = arith.select %137, %135, %138 : vector<8x256xi1>, vector<8x256xf32>
    %c15_i32_59 = arith.constant 15 : i32
    %140 = tpu.dynamic_rotate %129 by %c15_i32_59 dim 1 : vector<8x256xf32>, i32 -> vector<8x256xf32>
    %cst_60 = arith.constant 0.000000e+00 : f32
    %141 = vector.shape_cast %28 : vector<1x256xi1> to vector<1x256xi1>
    %142 = vector.broadcast %141 : vector<1x256xi1> to vector<8x256xi1>
    %143 = vector.broadcast %cst_60 : f32 to vector<8x256xf32>
    %144 = arith.select %142, %140, %143 : vector<8x256xi1>, vector<8x256xf32>
    %c1_i32_61 = arith.constant 1 : i32
    %145 = tpu.dynamic_rotate %129 by %c1_i32_61 dim 1 : vector<8x256xf32>, i32 -> vector<8x256xf32>
    %cst_62 = arith.constant 0.000000e+00 : f32
    %146 = vector.shape_cast %24 : vector<1x256xi1> to vector<1x256xi1>
    %147 = vector.broadcast %146 : vector<1x256xi1> to vector<8x256xi1>
    %148 = vector.broadcast %cst_62 : f32 to vector<8x256xf32>
    %149 = arith.select %147, %145, %148 : vector<8x256xi1>, vector<8x256xf32>
    %c255_i32_63 = arith.constant 255 : i32
    %150 = tpu.dynamic_rotate %129 by %c255_i32_63 dim 1 : vector<8x256xf32>, i32 -> vector<8x256xf32>
    %cst_64 = arith.constant 0.000000e+00 : f32
    %151 = vector.shape_cast %26 : vector<1x256xi1> to vector<1x256xi1>
    %152 = vector.broadcast %151 : vector<1x256xi1> to vector<8x256xi1>
    %153 = vector.broadcast %cst_64 : f32 to vector<8x256xf32>
    %154 = arith.select %152, %150, %153 : vector<8x256xi1>, vector<8x256xf32>
    %c241_i32_65 = arith.constant 241 : i32
    %155 = tpu.dynamic_rotate %129 by %c241_i32_65 dim 1 : vector<8x256xf32>, i32 -> vector<8x256xf32>
    %cst_66 = arith.constant 0.000000e+00 : f32
    %156 = vector.shape_cast %29 : vector<1x256xi1> to vector<1x256xi1>
    %157 = vector.broadcast %156 : vector<1x256xi1> to vector<8x256xi1>
    %158 = vector.broadcast %cst_66 : f32 to vector<8x256xf32>
    %159 = arith.select %157, %155, %158 : vector<8x256xi1>, vector<8x256xf32>
    %c240_i32_67 = arith.constant 240 : i32
    %160 = tpu.dynamic_rotate %129 by %c240_i32_67 dim 1 : vector<8x256xf32>, i32 -> vector<8x256xf32>
    %cst_68 = arith.constant 0.000000e+00 : f32
    %161 = vector.shape_cast %22 : vector<1x256xi1> to vector<1x256xi1>
    %162 = vector.broadcast %161 : vector<1x256xi1> to vector<8x256xi1>
    %163 = vector.broadcast %cst_68 : f32 to vector<8x256xf32>
    %164 = arith.select %162, %160, %163 : vector<8x256xi1>, vector<8x256xf32>
    %c239_i32_69 = arith.constant 239 : i32
    %165 = tpu.dynamic_rotate %129 by %c239_i32_69 dim 1 : vector<8x256xf32>, i32 -> vector<8x256xf32>
    %cst_70 = arith.constant 0.000000e+00 : f32
    %166 = vector.shape_cast %30 : vector<1x256xi1> to vector<1x256xi1>
    %167 = vector.broadcast %166 : vector<1x256xi1> to vector<8x256xi1>
    %168 = vector.broadcast %cst_70 : f32 to vector<8x256xf32>
    %169 = arith.select %167, %165, %168 : vector<8x256xi1>, vector<8x256xf32>
    %170 = tpu.concatenate %134, %139, %144, %149, %129, %154, %159, %164, %169 in 0 : vector<8x256xf32>, vector<8x256xf32>, vector<8x256xf32>, vector<8x256xf32>, vector<8x256xf32>, vector<8x256xf32>, vector<8x256xf32>, vector<8x256xf32>, vector<8x256xf32> -> vector<72x256xf32>
    %171 = arith.truncf %170 : vector<72x256xf32> to vector<72x256xbf16>
    %c0_71 = arith.constant 0 : index
    %c0_72 = arith.constant 0 : index
    %172 = vector.load %arg12[%c0_71, %c0_72] : memref<8x72xbf16, #tpu.memory_space<vmem>>, vector<8x72xbf16>
    %cst_73 = arith.constant dense<0.000000e+00> : vector<8x256xf32>
    %173 = tpu.matmul %172, %171, %cst_73 {dimension_numbers = #tpu.dot_dimension_numbers<[1], [0], [0], [1], [0, 0, 1, 1], [], []>} : vector<8x72xbf16>, vector<72x256xbf16>, vector<8x256xf32> -> vector<8x256xf32>
    %c0_74 = arith.constant 0 : index
    %c0_75 = arith.constant 0 : index
    %174 = vector.load %arg13[%c0_74, %c0_75] : memref<8x1xf32, #tpu.memory_space<vmem>>, vector<8x1xf32>
    %175 = vector.broadcast %174 : vector<8x1xf32> to vector<8x256xf32>
    %176 = arith.addf %173, %175 : vector<8x256xf32>
    %c0_76 = arith.constant 0 : index
    %c0_77 = arith.constant 0 : index
    %177 = vector.load %arg14[%c0_76, %c0_77] : memref<8x4xbf16, #tpu.memory_space<vmem>>, vector<8x4xbf16>
    %178 = arith.extf %177 : vector<8x4xbf16> to vector<8x4xf32>
    %cst_78 = arith.constant dense<0.000000e+00> : vector<8x256xf32>
    %179 = tpu.matmul %178, %1, %cst_78 {dimension_numbers = #tpu.dot_dimension_numbers<[1], [0], [0], [1], [0, 0, 1, 1], [], []>} : vector<8x4xf32>, vector<4x256xf32>, vector<8x256xf32> -> vector<8x256xf32>
    %c0_79 = arith.constant 0 : index
    %c0_80 = arith.constant 0 : index
    %180 = vector.load %arg15[%c0_79, %c0_80] : memref<8x1xf32, #tpu.memory_space<vmem>>, vector<8x1xf32>
    %181 = vector.broadcast %180 : vector<8x1xf32> to vector<8x256xf32>
    %182 = arith.addf %179, %181 : vector<8x256xf32>
    %183 = arith.addf %182, %176 : vector<8x256xf32>
    %c0_81 = arith.constant 0 : index
    %c0_82 = arith.constant 0 : index
    %c0_83 = arith.constant 0 : index
    %184 = vector.load %arg16[%c0_81, %c0_82, %c0_83] : memref<1x8x256xf32, #tpu.memory_space<vmem>>, vector<1x8x256xf32>
    %185 = vector.shape_cast %184 : vector<1x8x256xf32> to vector<8x256xf32>
    %186 = vector.shape_cast %183 : vector<8x256xf32> to vector<1x8x256xf32>
    tpu.vector_store %arg16[%c0_81, %c0_82, %c0_83], %186 {strides = array<i32>} : memref<1x8x256xf32, #tpu.memory_space<vmem>>, vector<1x8x256xf32>,
    return
  }
  func.func @transform_0(%arg0: i32) -> (i32, i32, i32) {
    %c0_i32 = arith.constant 0 : i32
    %c0_i32_0 = arith.constant 0 : i32
    %c0_i32_1 = arith.constant 0 : i32
    return %arg0, %c0_i32, %c0_i32_0 : i32, i32, i32
  }
  func.func @transform_1(%arg0: i32) -> (i32, i32, i32) {
    %c0_i32 = arith.constant 0 : i32
    %c0_i32_0 = arith.constant 0 : i32
    %c0_i32_1 = arith.constant 0 : i32
    return %arg0, %c0_i32, %c0_i32_0 : i32, i32, i32
  }
  func.func @transform_2(%arg0: i32) -> (i32, i32, i32) {
    %c0_i32 = arith.constant 0 : i32
    %c0_i32_0 = arith.constant 0 : i32
    %c0_i32_1 = arith.constant 0 : i32
    return %arg0, %c0_i32, %c0_i32_0 : i32, i32, i32
  }
  func.func @transform_3(%arg0: i32) -> (i32, i32, i32) {
    %c0_i32 = arith.constant 0 : i32
    %c0_i32_0 = arith.constant 0 : i32
    %c0_i32_1 = arith.constant 0 : i32
    return %arg0, %c0_i32, %c0_i32_0 : i32, i32, i32
  }
  func.func @transform_4(%arg0: i32) -> (i32, i32, i32) {
    %c0_i32 = arith.constant 0 : i32
    %c0_i32_0 = arith.constant 0 : i32
    %c0_i32_1 = arith.constant 0 : i32
    return %arg0, %c0_i32, %c0_i32_0 : i32, i32, i32
  }
  func.func @transform_5(%arg0: i32) -> (i32, i32, i32) {
    %c0_i32 = arith.constant 0 : i32
    %c0_i32_0 = arith.constant 0 : i32
    %c0_i32_1 = arith.constant 0 : i32
    return %arg0, %c0_i32, %c0_i32_0 : i32, i32, i32
  }
  func.func @transform_6(%arg0: i32) -> (i32, i32, i32) {
    %c0_i32 = arith.constant 0 : i32
    %c0_i32_0 = arith.constant 0 : i32
    %c0_i32_1 = arith.constant 0 : i32
    return %arg0, %c0_i32, %c0_i32_0 : i32, i32, i32
  }
  func.func @transform_7(%arg0: i32) -> (i32, i32, i32) {
    %c0_i32 = arith.constant 0 : i32
    %c0_i32_0 = arith.constant 0 : i32
    %c0_i32_1 = arith.constant 0 : i32
    return %arg0, %c0_i32, %c0_i32_0 : i32, i32, i32
  }
  func.func @transform_8(%arg0: i32) -> (i32, i32, i32) {
    %c0_i32 = arith.constant 0 : i32
    %c0_i32_0 = arith.constant 0 : i32
    %c0_i32_1 = arith.constant 0 : i32
    return %arg0, %c0_i32, %c0_i32_0 : i32, i32, i32
  }
  func.func @transform_9(%arg0: i32) -> (i32, i32) {
    %c0_i32 = arith.constant 0 : i32
    %c0_i32_0 = arith.constant 0 : i32
    %c0_i32_1 = arith.constant 0 : i32
    return %c0_i32, %c0_i32_0 : i32, i32
  }
  func.func @transform_10(%arg0: i32) -> (i32, i32) {
    %c0_i32 = arith.constant 0 : i32
    %c0_i32_0 = arith.constant 0 : i32
    %c0_i32_1 = arith.constant 0 : i32
    return %c0_i32, %c0_i32_0 : i32, i32
  }
  func.func @transform_11(%arg0: i32) -> (i32, i32) {
    %c0_i32 = arith.constant 0 : i32
    %c0_i32_0 = arith.constant 0 : i32
    %c0_i32_1 = arith.constant 0 : i32
    return %c0_i32, %c0_i32_0 : i32, i32
  }
  func.func @transform_12(%arg0: i32) -> (i32, i32) {
    %c0_i32 = arith.constant 0 : i32
    %c0_i32_0 = arith.constant 0 : i32
    %c0_i32_1 = arith.constant 0 : i32
    return %c0_i32, %c0_i32_0 : i32, i32
  }
  func.func @transform_13(%arg0: i32) -> (i32, i32) {
    %c0_i32 = arith.constant 0 : i32
    %c0_i32_0 = arith.constant 0 : i32
    %c0_i32_1 = arith.constant 0 : i32
    return %c0_i32, %c0_i32_0 : i32, i32
  }
  func.func @transform_14(%arg0: i32) -> (i32, i32) {
    %c0_i32 = arith.constant 0 : i32
    %c0_i32_0 = arith.constant 0 : i32
    %c0_i32_1 = arith.constant 0 : i32
    return %c0_i32, %c0_i32_0 : i32, i32
  }
  func.func @transform_15(%arg0: i32) -> (i32, i32, i32) {
    %c0_i32 = arith.constant 0 : i32
    %c0_i32_0 = arith.constant 0 : i32
    %c0_i32_1 = arith.constant 0 : i32
    return %arg0, %c0_i32, %c0_i32_0 : i32, i32, i32
  }
}

</mosaic_0001>

<llo_original>
// kernel: tpu_custom_call.1
$region0: #{tpu_custom_call.1}
  #allocation0 [shape = 'u32[]', space=smem, size = 0x4, offset = 0x4, fixed_abs, tag = 'smem constant byte address 0x4 - core index']
  #allocation1 [shape = 'u32[144,128]{1,0:T(1,128)}', space=vmem, size = 0x12000, scoped, tag = 'internal scratch']
  %s0 = inlined_call_operand.vmem [shape: f32[2,4,256], index: 0, kind: input, shape index: {}]
  %s1 = inlined_call_operand.vmem [shape: f32[2,4,1], index: 1, kind: input, shape index: {}]
  %s2 = inlined_call_operand.vmem [shape: f32[2,4,1], index: 2, kind: input, shape index: {}]
  %s3 = inlined_call_operand.vmem [shape: f32[2,4,1], index: 3, kind: input, shape index: {}]
  %s4 = inlined_call_operand.vmem [shape: f32[2,4,1], index: 4, kind: input, shape index: {}]
  %s5 = inlined_call_operand.vmem [shape: f32[2,8,1], index: 5, kind: input, shape index: {}]
  %s6 = inlined_call_operand.vmem [shape: f32[2,8,1], index: 6, kind: input, shape index: {}]
  %s7 = inlined_call_operand.vmem [shape: f32[2,8,1], index: 7, kind: input, shape index: {}]
  %s8 = inlined_call_operand.vmem [shape: f32[2,8,1], index: 8, kind: input, shape index: {}]
  %s9 = inlined_call_operand.vmem [shape: bf16[8,36], index: 9, kind: input, shape index: {}]
  %s10 = inlined_call_operand.vmem [shape: f32[8,1], index: 10, kind: input, shape index: {}]
  %s11 = inlined_call_operand.vmem [shape: bf16[8,72], index: 11, kind: input, shape index: {}]
  %s12 = inlined_call_operand.vmem [shape: f32[8,1], index: 12, kind: input, shape index: {}]
  %s13 = inlined_call_operand.vmem [shape: bf16[8,4], index: 13, kind: input, shape index: {}]
  %s14 = inlined_call_operand.vmem [shape: f32[8,1], index: 14, kind: input, shape index: {}]
  %s15 = inlined_call_operand.hbm [shape: f32[2,8,256], index: 15, kind: output, shape index: {}]
  %s16 = sld [smem:[#allocation0]]
  $region93: #{tpu_custom_call.1} parent=0
    _
  %s18 = ssub.s32 1, %s16
  %s19 = scalar_select 0, %s18, %s16
  $region1: #{tpu_custom_call.1} parent=0
    #allocation2 [shape = 'u8[16384]{0}', space=vmem, size = 0x4000, scoped, tag = 'output window, operand 0']
    #allocation3 [shape = 's32[2]{0}', space=sflag, size = 0x8, scoped, tag = 'scoped memory for tpu_custom_call.1']
    %20 = vsyncpa [#allocation3], 0
    %s21 = scalar_lea.sflag [#allocation3], 1
    %22 = vsyncpa %s21, 0
    loop: start=0, step=1, limit=4
    $region2: #{tpu_custom_call.1} parent=1 // loop_pre_header
      _
    $region3: #{tpu_custom_call.1} parent=1 // loop_header
      %s24 = sphi 0, %s28
      %p25 = scmp.ge.s32.totalorder %s24, 4
      %s34 = sphi 0, %s36
      %s37 = sphi 0, %s34
      %s38 = sphi 0, %s37
      %s54 = sphi 0, %s38
      %s60 = sphi 0, %s62
      %s63 = sphi 0, %s60
      %s64 = sphi 0, %s63
      %s80 = sphi 0, %s64
      %s86 = sphi 0, %s88
      %s89 = sphi 0, %s86
      %s90 = sphi 0, %s89
      %s106 = sphi 0, %s90
      %s112 = sphi 0, %s114
      %s115 = sphi 0, %s112
      %s116 = sphi 0, %s115
      %s132 = sphi 0, %s116
      %s138 = sphi 0, %s140
      %s141 = sphi 0, %s138
      %s142 = sphi 0, %s141
      %s158 = sphi 0, %s142
      %s164 = sphi 0, %s166
      %s167 = sphi 0, %s164
      %s168 = sphi 0, %s167
      %s184 = sphi 0, %s168
      %s190 = sphi 0, %s192
      %s193 = sphi 0, %s190
      %s194 = sphi 0, %s193
      %s210 = sphi 0, %s194
      %s216 = sphi 0, %s218
      %s219 = sphi 0, %s216
      %s220 = sphi 0, %s219
      %s236 = sphi 0, %s220
      %s242 = sphi 0, %s244
      %s245 = sphi 0, %s242
      %s246 = sphi 0, %s245
      %s262 = sphi 0, %s246
      %s266 = sphi 0, %s266
      %s268 = sphi 0, %s266
      %s269 = sphi 0, %s268
      %s283 = sphi 0, %s269
      %s287 = sphi 0, %s287
      %s289 = sphi 0, %s287
      %s290 = sphi 0, %s289
      %s304 = sphi 0, %s290
      %s308 = sphi 0, %s308
      %s310 = sphi 0, %s308
      %s311 = sphi 0, %s310
      %s325 = sphi 0, %s311
      %s329 = sphi 0, %s329
      %s331 = sphi 0, %s329
      %s332 = sphi 0, %s331
      %s346 = sphi 0, %s332
      %s350 = sphi 0, %s350
      %s352 = sphi 0, %s350
      %s353 = sphi 0, %s352
      %s367 = sphi 0, %s353
      %s371 = sphi 0, %s371
      %s373 = sphi 0, %s371
      %s374 = sphi 0, %s373
      %s388 = sphi 0, %s374
      %s394 = sphi 0, %s396
      %s397 = sphi 0, %s394
      %s398 = sphi 0, %s397
      %s414 = sphi 0, %s398
    $region4: #{tpu_custom_call.1} parent=1 // loop_header_branch
      %27 = sbr.rel (%p25) target = $region8
    $region5: #{tpu_custom_call.1} parent=1 // loop_body
      %s29 = ssub.s32 %s24, 1
      %s30 = ssub.s32 %s24, 2
      %s31 = sadd.s32 %s24, 1
      %s32 = ssub.s32 %s24, %s31
      %p33 = scmp.eq.s32.totalorder %s32, 0
      %s35 = sadd.s32 %s34, 1
      %s36 = scalar_select %p33, %s34, %s35
      %p39 = pneg %p33
      %p40 = scmp.eq.s32.totalorder %s24, 1
      %p41 = por %p39, %p40
      %p42 = scmp.ne.s32.totalorder %s34, %s37
      %p43 = scmp.eq.s32.totalorder %s24, 0
      %p44 = por %p42, %p43
      %p45 = scmp.ne.s32.totalorder %s34, %s37
      %p46 = scmp.eq.s32.totalorder %s29, 1
      %p47 = por %p45, %p46
      %p48 = scmp.ne.s32.totalorder %s37, %s38
      %p49 = scmp.eq.s32.totalorder %s29, 0
      %p50 = por %p48, %p49
      %p51 = scmp.ne.s32.totalorder %s37, %s38
      %p52 = scmp.eq.s32.totalorder %s30, 1
      %p53 = por %p51, %p52
      %p55 = scmp.ne.s32.totalorder %s38, %s54
      %p56 = scmp.eq.s32.totalorder %s30, 0
      %p57 = por %p55, %p56
      %s58 = ssub.s32 %s24, %s31
      %p59 = scmp.eq.s32.totalorder %s58, 0
      %s61 = sadd.s32 %s60, 1
      %s62 = scalar_select %p59, %s60, %s61
      %p65 = pneg %p59
      %p66 = scmp.eq.s32.totalorder %s24, 1
      %p67 = por %p65, %p66
      %p68 = scmp.ne.s32.totalorder %s60, %s63
      %p69 = scmp.eq.s32.totalorder %s24, 0
      %p70 = por %p68, %p69
      %p71 = scmp.ne.s32.totalorder %s60, %s63
      %p72 = scmp.eq.s32.totalorder %s29, 1
      %p73 = por %p71, %p72
      %p74 = scmp.ne.s32.totalorder %s63, %s64
      %p75 = scmp.eq.s32.totalorder %s29, 0
      %p76 = por %p74, %p75
      %p77 = scmp.ne.s32.totalorder %s63, %s64
      %p78 = scmp.eq.s32.totalorder %s30, 1
      %p79 = por %p77, %p78
      %p81 = scmp.ne.s32.totalorder %s64, %s80
      %p82 = scmp.eq.s32.totalorder %s30, 0
      %p83 = por %p81, %p82
      %s84 = ssub.s32 %s24, %s31
      %p85 = scmp.eq.s32.totalorder %s84, 0
      %s87 = sadd.s32 %s86, 1
      %s88 = scalar_select %p85, %s86, %s87
      %p91 = pneg %p85
      %p92 = scmp.eq.s32.totalorder %s24, 1
      %p93 = por %p91, %p92
      %p94 = scmp.ne.s32.totalorder %s86, %s89
      %p95 = scmp.eq.s32.totalorder %s24, 0
      %p96 = por %p94, %p95
      %p97 = scmp.ne.s32.totalorder %s86, %s89
      %p98 = scmp.eq.s32.totalorder %s29, 1
      %p99 = por %p97, %p98
      %p100 = scmp.ne.s32.totalorder %s89, %s90
      %p101 = scmp.eq.s32.totalorder %s29, 0
      %p102 = por %p100, %p101
      %p103 = scmp.ne.s32.totalorder %s89, %s90
      %p104 = scmp.eq.s32.totalorder %s30, 1
      %p105 = por %p103, %p104
      %p107 = scmp.ne.s32.totalorder %s90, %s106
      %p108 = scmp.eq.s32.totalorder %s30, 0
      %p109 = por %p107, %p108
      %s110 = ssub.s32 %s24, %s31
      %p111 = scmp.eq.s32.totalorder %s110, 0
      %s113 = sadd.s32 %s112, 1
      %s114 = scalar_select %p111, %s112, %s113
      %p117 = pneg %p111
      %p118 = scmp.eq.s32.totalorder %s24, 1
      %p119 = por %p117, %p118
      %p120 = scmp.ne.s32.totalorder %s112, %s115
      %p121 = scmp.eq.s32.totalorder %s24, 0
      %p122 = por %p120, %p121
      %p123 = scmp.ne.s32.totalorder %s112, %s115
      %p124 = scmp.eq.s32.totalorder %s29, 1
      %p125 = por %p123, %p124
      %p126 = scmp.ne.s32.totalorder %s115, %s116
      %p127 = scmp.eq.s32.totalorder %s29, 0
      %p128 = por %p126, %p127
      %p129 = scmp.ne.s32.totalorder %s115, %s116
      %p130 = scmp.eq.s32.totalorder %s30, 1
      %p131 = por %p129, %p130
      %p133 = scmp.ne.s32.totalorder %s116, %s132
      %p134 = scmp.eq.s32.totalorder %s30, 0
      %p135 = por %p133, %p134
      %s136 = ssub.s32 %s24, %s31
      %p137 = scmp.eq.s32.totalorder %s136, 0
      %s139 = sadd.s32 %s138, 1
      %s140 = scalar_select %p137, %s138, %s139
      %p143 = pneg %p137
      %p144 = scmp.eq.s32.totalorder %s24, 1
      %p145 = por %p143, %p144
      %p146 = scmp.ne.s32.totalorder %s138, %s141
      %p147 = scmp.eq.s32.totalorder %s24, 0
      %p148 = por %p146, %p147
      %p149 = scmp.ne.s32.totalorder %s138, %s141
      %p150 = scmp.eq.s32.totalorder %s29, 1
      %p151 = por %p149, %p150
      %p152 = scmp.ne.s32.totalorder %s141, %s142
      %p153 = scmp.eq.s32.totalorder %s29, 0
      %p154 = por %p152, %p153
      %p155 = scmp.ne.s32.totalorder %s141, %s142
      %p156 = scmp.eq.s32.totalorder %s30, 1
      %p157 = por %p155, %p156
      %p159 = scmp.ne.s32.totalorder %s142, %s158
      %p160 = scmp.eq.s32.totalorder %s30, 0
      %p161 = por %p159, %p160
      %s162 = ssub.s32 %s24, %s31
      %p163 = scmp.eq.s32.totalorder %s162, 0
      %s165 = sadd.s32 %s164, 1
      %s166 = scalar_select %p163, %s164, %s165
      %p169 = pneg %p163
      %p170 = scmp.eq.s32.totalorder %s24, 1
      %p171 = por %p169, %p170
      %p172 = scmp.ne.s32.totalorder %s164, %s167
      %p173 = scmp.eq.s32.totalorder %s24, 0
      %p174 = por %p172, %p173
      %p175 = scmp.ne.s32.totalorder %s164, %s167
      %p176 = scmp.eq.s32.totalorder %s29, 1
      %p177 = por %p175, %p176
      %p178 = scmp.ne.s32.totalorder %s167, %s168
      %p179 = scmp.eq.s32.totalorder %s29, 0
      %p180 = por %p178, %p179
      %p181 = scmp.ne.s32.totalorder %s167, %s168
      %p182 = scmp.eq.s32.totalorder %s30, 1
      %p183 = por %p181, %p182
      %p185 = scmp.ne.s32.totalorder %s168, %s184
      %p186 = scmp.eq.s32.totalorder %s30, 0
      %p187 = por %p185, %p186
      %s188 = ssub.s32 %s24, %s31
      %p189 = scmp.eq.s32.totalorder %s188, 0
      %s191 = sadd.s32 %s190, 1
      %s192 = scalar_select %p189, %s190, %s191
      %p195 = pneg %p189
      %p196 = scmp.eq.s32.totalorder %s24, 1
      %p197 = por %p195, %p196
      %p198 = scmp.ne.s32.totalorder %s190, %s193
      %p199 = scmp.eq.s32.totalorder %s24, 0
      %p200 = por %p198, %p199
      %p201 = scmp.ne.s32.totalorder %s190, %s193
      %p202 = scmp.eq.s32.totalorder %s29, 1
      %p203 = por %p201, %p202
      %p204 = scmp.ne.s32.totalorder %s193, %s194
      %p205 = scmp.eq.s32.totalorder %s29, 0
      %p206 = por %p204, %p205
      %p207 = scmp.ne.s32.totalorder %s193, %s194
      %p208 = scmp.eq.s32.totalorder %s30, 1
      %p209 = por %p207, %p208
      %p211 = scmp.ne.s32.totalorder %s194, %s210
      %p212 = scmp.eq.s32.totalorder %s30, 0
      %p213 = por %p211, %p212
      %s214 = ssub.s32 %s24, %s31
      %p215 = scmp.eq.s32.totalorder %s214, 0
      %s217 = sadd.s32 %s216, 1
      %s218 = scalar_select %p215, %s216, %s217
      %p221 = pneg %p215
      %p222 = scmp.eq.s32.totalorder %s24, 1
      %p223 = por %p221, %p222
      %p224 = scmp.ne.s32.totalorder %s216, %s219
      %p225 = scmp.eq.s32.totalorder %s24, 0
      %p226 = por %p224, %p225
      %p227 = scmp.ne.s32.totalorder %s216, %s219
      %p228 = scmp.eq.s32.totalorder %s29, 1
      %p229 = por %p227, %p228
      %p230 = scmp.ne.s32.totalorder %s219, %s220
      %p231 = scmp.eq.s32.totalorder %s29, 0
      %p232 = por %p230, %p231
      %p233 = scmp.ne.s32.totalorder %s219, %s220
      %p234 = scmp.eq.s32.totalorder %s30, 1
      %p235 = por %p233, %p234
      %p237 = scmp.ne.s32.totalorder %s220, %s236
      %p238 = scmp.eq.s32.totalorder %s30, 0
      %p239 = por %p237, %p238
      %s240 = ssub.s32 %s24, %s31
      %p241 = scmp.eq.s32.totalorder %s240, 0
      %s243 = sadd.s32 %s242, 1
      %s244 = scalar_select %p241, %s242, %s243
      %p247 = pneg %p241
      %p248 = scmp.eq.s32.totalorder %s24, 1
      %p249 = por %p247, %p248
      %p250 = scmp.ne.s32.totalorder %s242, %s245
      %p251 = scmp.eq.s32.totalorder %s24, 0
      %p252 = por %p250, %p251
      %p253 = scmp.ne.s32.totalorder %s242, %s245
      %p254 = scmp.eq.s32.totalorder %s29, 1
      %p255 = por %p253, %p254
      %p256 = scmp.ne.s32.totalorder %s245, %s246
      %p257 = scmp.eq.s32.totalorder %s29, 0
      %p258 = por %p256, %p257
      %p259 = scmp.ne.s32.totalorder %s245, %s246
      %p260 = scmp.eq.s32.totalorder %s30, 1
      %p261 = por %p259, %p260
      %p263 = scmp.ne.s32.totalorder %s246, %s262
      %p264 = scmp.eq.s32.totalorder %s30, 0
      %p265 = por %p263, %p264
      %s267 = sadd.s32 %s266, 1
      %p270 = scmp.eq.s32.totalorder %s24, 1
      %p271 = scmp.ne.s32.totalorder %s266, %s268
      %p272 = scmp.eq.s32.totalorder %s24, 0
      %p273 = por %p271, %p272
      %p274 = scmp.ne.s32.totalorder %s266, %s268
      %p275 = scmp.eq.s32.totalorder %s29, 1
      %p276 = por %p274, %p275
      %p277 = scmp.ne.s32.totalorder %s268, %s269
      %p278 = scmp.eq.s32.totalorder %s29, 0
      %p279 = por %p277, %p278
      %p280 = scmp.ne.s32.totalorder %s268, %s269
      %p281 = scmp.eq.s32.totalorder %s30, 1
      %p282 = por %p280, %p281
      %p284 = scmp.ne.s32.totalorder %s269, %s283
      %p285 = scmp.eq.s32.totalorder %s30, 0
      %p286 = por %p284, %p285
      %s288 = sadd.s32 %s287, 1
      %p291 = scmp.eq.s32.totalorder %s24, 1
      %p292 = scmp.ne.s32.totalorder %s287, %s289
      %p293 = scmp.eq.s32.totalorder %s24, 0
      %p294 = por %p292, %p293
      %p295 = scmp.ne.s32.totalorder %s287, %s289
      %p296 = scmp.eq.s32.totalorder %s29, 1
      %p297 = por %p295, %p296
      %p298 = scmp.ne.s32.totalorder %s289, %s290
      %p299 = scmp.eq.s32.totalorder %s29, 0
      %p300 = por %p298, %p299
      %p301 = scmp.ne.s32.totalorder %s289, %s290
      %p302 = scmp.eq.s32.totalorder %s30, 1
      %p303 = por %p301, %p302
      %p305 = scmp.ne.s32.totalorder %s290, %s304
      %p306 = scmp.eq.s32.totalorder %s30, 0
      %p307 = por %p305, %p306
      %s309 = sadd.s32 %s308, 1
      %p312 = scmp.eq.s32.totalorder %s24, 1
      %p313 = scmp.ne.s32.totalorder %s308, %s310
      %p314 = scmp.eq.s32.totalorder %s24, 0
      %p315 = por %p313, %p314
      %p316 = scmp.ne.s32.totalorder %s308, %s310
      %p317 = scmp.eq.s32.totalorder %s29, 1
      %p318 = por %p316, %p317
      %p319 = scmp.ne.s32.totalorder %s310, %s311
      %p320 = scmp.eq.s32.totalorder %s29, 0
      %p321 = por %p319, %p320
      %p322 = scmp.ne.s32.totalorder %s310, %s311
      %p323 = scmp.eq.s32.totalorder %s30, 1
      %p324 = por %p322, %p323
      %p326 = scmp.ne.s32.totalorder %s311, %s325
      %p327 = scmp.eq.s32.totalorder %s30, 0
      %p328 = por %p326, %p327
      %s330 = sadd.s32 %s329, 1
      %p333 = scmp.eq.s32.totalorder %s24, 1
      %p334 = scmp.ne.s32.totalorder %s329, %s331
      %p335 = scmp.eq.s32.totalorder %s24, 0
      %p336 = por %p334, %p335
      %p337 = scmp.ne.s32.totalorder %s329, %s331
      %p338 = scmp.eq.s32.totalorder %s29, 1
      %p339 = por %p337, %p338
      %p340 = scmp.ne.s32.totalorder %s331, %s332
      %p341 = scmp.eq.s32.totalorder %s29, 0
      %p342 = por %p340, %p341
      %p343 = scmp.ne.s32.totalorder %s331, %s332
      %p344 = scmp.eq.s32.totalorder %s30, 1
      %p345 = por %p343, %p344
      %p347 = scmp.ne.s32.totalorder %s332, %s346
      %p348 = scmp.eq.s32.totalorder %s30, 0
      %p349 = por %p347, %p348
      %s351 = sadd.s32 %s350, 1
      %p354 = scmp.eq.s32.totalorder %s24, 1
      %p355 = scmp.ne.s32.totalorder %s350, %s352
      %p356 = scmp.eq.s32.totalorder %s24, 0
      %p357 = por %p355, %p356
      %p358 = scmp.ne.s32.totalorder %s350, %s352
      %p359 = scmp.eq.s32.totalorder %s29, 1
      %p360 = por %p358, %p359
      %p361 = scmp.ne.s32.totalorder %s352, %s353
      %p362 = scmp.eq.s32.totalorder %s29, 0
      %p363 = por %p361, %p362
      %p364 = scmp.ne.s32.totalorder %s352, %s353
      %p365 = scmp.eq.s32.totalorder %s30, 1
      %p366 = por %p364, %p365
      %p368 = scmp.ne.s32.totalorder %s353, %s367
      %p369 = scmp.eq.s32.totalorder %s30, 0
      %p370 = por %p368, %p369
      %s372 = sadd.s32 %s371, 1
      %p375 = scmp.eq.s32.totalorder %s24, 1
      %p376 = scmp.ne.s32.totalorder %s371, %s373
      %p377 = scmp.eq.s32.totalorder %s24, 0
      %p378 = por %p376, %p377
      %p379 = scmp.ne.s32.totalorder %s371, %s373
      %p380 = scmp.eq.s32.totalorder %s29, 1
      %p381 = por %p379, %p380
      %p382 = scmp.ne.s32.totalorder %s373, %s374
      %p383 = scmp.eq.s32.totalorder %s29, 0
      %p384 = por %p382, %p383
      %p385 = scmp.ne.s32.totalorder %s373, %s374
      %p386 = scmp.eq.s32.totalorder %s30, 1
      %p387 = por %p385, %p386
      %p389 = scmp.ne.s32.totalorder %s374, %s388
      %p390 = scmp.eq.s32.totalorder %s30, 0
      %p391 = por %p389, %p390
      %s392 = ssub.s32 %s24, %s31
      %p393 = scmp.eq.s32.totalorder %s392, 0
      %s395 = sadd.s32 %s394, 1
      %s396 = scalar_select %p393, %s394, %s395
      %p399 = pneg %p393
      %p400 = scmp.eq.s32.totalorder %s24, 1
      %p401 = por %p399, %p400
      %p402 = scmp.ne.s32.totalorder %s394, %s397
      %p403 = scmp.eq.s32.totalorder %s24, 0
      %p404 = por %p402, %p403
      %p405 = scmp.ne.s32.totalorder %s394, %s397
      %p406 = scmp.eq.s32.totalorder %s29, 1
      %p407 = por %p405, %p406
      %p408 = scmp.ne.s32.totalorder %s397, %s398
      %p409 = scmp.eq.s32.totalorder %s29, 0
      %p410 = por %p408, %p409
      %p411 = scmp.ne.s32.totalorder %s397, %s398
      %p412 = scmp.eq.s32.totalorder %s30, 1
      %p413 = por %p411, %p412
      %p415 = scmp.ne.s32.totalorder %s398, %s414
      %p416 = scmp.eq.s32.totalorder %s30, 0
      %p417 = por %p415, %p416
      %p418 = scmp.le.s32.totalorder 1, %s24
      %p419 = scmp.lt.s32.totalorder %s24, 3
      %p420 = pnand %p418, %p419
      %p421 = pneg %p420
      // Predicated region
      $region9: #{tpu_custom_call.1} parent=5 // pred_check
        _
      $region10: #{tpu_custom_call.1} parent=5 // pred_check_branch
        %423 = sbr.rel (%p420) target = $region12
      $region11: #{tpu_custom_call.1} parent=5 // pred_region
        %s424 = ssub.s32 %s24, 1
        // Predicated region
        $region13: #{tpu_custom_call.1} parent=11 // pred_check
          %p425 = pneg %p279
        $region14: #{tpu_custom_call.1} parent=11 // pred_check_branch
          %427 = sbr.rel (%p425) target = $region16
        $region15: #{tpu_custom_call.1} parent=11 // pred_region
          _
        $region16: #{tpu_custom_call.1} parent=11 // pred_fallthru
          _
        // Predicated region
        $region17: #{tpu_custom_call.1} parent=11 // pred_check
          %p428 = pneg %p300
        $region18: #{tpu_custom_call.1} parent=11 // pred_check_branch
          %430 = sbr.rel (%p428) target = $region20
        $region19: #{tpu_custom_call.1} parent=11 // pred_region
          _
        $region20: #{tpu_custom_call.1} parent=11 // pred_fallthru
          _
        // Predicated region
        $region21: #{tpu_custom_call.1} parent=11 // pred_check
          %p431 = pneg %p321
        $region22: #{tpu_custom_call.1} parent=11 // pred_check_branch
          %433 = sbr.rel (%p431) target = $region24
        $region23: #{tpu_custom_call.1} parent=11 // pred_region
          _
        $region24: #{tpu_custom_call.1} parent=11 // pred_fallthru
          _
        // Predicated region
        $region25: #{tpu_custom_call.1} parent=11 // pred_check
          %p434 = pneg %p342
        $region26: #{tpu_custom_call.1} parent=11 // pred_check_branch
          %436 = sbr.rel (%p434) target = $region28
        $region27: #{tpu_custom_call.1} parent=11 // pred_region
          _
        $region28: #{tpu_custom_call.1} parent=11 // pred_fallthru
          _
        // Predicated region
        $region29: #{tpu_custom_call.1} parent=11 // pred_check
          %p437 = pneg %p363
        $region30: #{tpu_custom_call.1} parent=11 // pred_check_branch
          %439 = sbr.rel (%p437) target = $region32
        $region31: #{tpu_custom_call.1} parent=11 // pred_region
          _
        $region32: #{tpu_custom_call.1} parent=11 // pred_fallthru
          _
        // Predicated region
        $region33: #{tpu_custom_call.1} parent=11 // pred_check
          %p440 = pneg %p384
        $region34: #{tpu_custom_call.1} parent=11 // pred_check_branch
          %442 = sbr.rel (%p440) target = $region36
        $region35: #{tpu_custom_call.1} parent=11 // pred_region
          _
        $region36: #{tpu_custom_call.1} parent=11 // pred_fallthru
          _
      $region12: #{tpu_custom_call.1} parent=5 // pred_fallthru
        _
      %p443 = scmp.lt.s32.totalorder %s24, 2
      // Predicated region
      $region37: #{tpu_custom_call.1} parent=5 // pred_check
        %p444 = pneg %p443
      $region38: #{tpu_custom_call.1} parent=5 // pred_check_branch
        %446 = sbr.rel (%p444) target = $region40
      $region39: #{tpu_custom_call.1} parent=5 // pred_region
        // Predicated region
        $region41: #{tpu_custom_call.1} parent=39 // pred_check
          %p447 = pneg %p44
        $region42: #{tpu_custom_call.1} parent=39 // pred_check_branch
          %449 = sbr.rel (%p447) target = $region44
        $region43: #{tpu_custom_call.1} parent=39 // pred_region
          %p450 = scmp.lt.s32.totalorder %s24, 1
          %s451 = scalar_select %p450, %s24, 1
          %s452 = smul.addr %s451, 2
          %s453 = smul.addr %s452, 4
          %s454 = scalar_lea.vmem %s0, %s453
        $region44: #{tpu_custom_call.1} parent=39 // pred_fallthru
          _
        // Predicated region
        $region45: #{tpu_custom_call.1} parent=39 // pred_check
          %p455 = pneg %p70
        $region46: #{tpu_custom_call.1} parent=39 // pred_check_branch
          %457 = sbr.rel (%p455) target = $region48
        $region47: #{tpu_custom_call.1} parent=39 // pred_region
          %p458 = scmp.lt.s32.totalorder %s24, 1
          %s459 = scalar_select %p458, %s24, 1
          %s460 = smul.addr %s459, 4
          %s461 = scalar_lea.vmem %s1, %s460
        $region48: #{tpu_custom_call.1} parent=39 // pred_fallthru
          _
        // Predicated region
        $region49: #{tpu_custom_call.1} parent=39 // pred_check
          %p462 = pneg %p96
        $region50: #{tpu_custom_call.1} parent=39 // pred_check_branch
          %464 = sbr.rel (%p462) target = $region52
        $region51: #{tpu_custom_call.1} parent=39 // pred_region
          %p465 = scmp.lt.s32.totalorder %s24, 1
          %s466 = scalar_select %p465, %s24, 1
          %s467 = smul.addr %s466, 4
          %s468 = scalar_lea.vmem %s2, %s467
        $region52: #{tpu_custom_call.1} parent=39 // pred_fallthru
          _
        // Predicated region
        $region53: #{tpu_custom_call.1} parent=39 // pred_check
          %p469 = pneg %p122
        $region54: #{tpu_custom_call.1} parent=39 // pred_check_branch
          %471 = sbr.rel (%p469) target = $region56
        $region55: #{tpu_custom_call.1} parent=39 // pred_region
          %p472 = scmp.lt.s32.totalorder %s24, 1
          %s473 = scalar_select %p472, %s24, 1
          %s474 = smul.addr %s473, 4
          %s475 = scalar_lea.vmem %s3, %s474
        $region56: #{tpu_custom_call.1} parent=39 // pred_fallthru
          _
        // Predicated region
        $region57: #{tpu_custom_call.1} parent=39 // pred_check
          %p476 = pneg %p148
        $region58: #{tpu_custom_call.1} parent=39 // pred_check_branch
          %478 = sbr.rel (%p476) target = $region60
        $region59: #{tpu_custom_call.1} parent=39 // pred_region
          %p479 = scmp.lt.s32.totalorder %s24, 1
          %s480 = scalar_select %p479, %s24, 1
          %s481 = smul.addr %s480, 4
          %s482 = scalar_lea.vmem %s4, %s481
        $region60: #{tpu_custom_call.1} parent=39 // pred_fallthru
          _
        // Predicated region
        $region61: #{tpu_custom_call.1} parent=39 // pred_check
          %p483 = pneg %p174
        $region62: #{tpu_custom_call.1} parent=39 // pred_check_branch
          %485 = sbr.rel (%p483) target = $region64
        $region63: #{tpu_custom_call.1} parent=39 // pred_region
          %p486 = scmp.lt.s32.totalorder %s24, 1
          %s487 = scalar_select %p486, %s24, 1
          %s488 = smul.addr %s487, 8
          %s489 = scalar_lea.vmem %s5, %s488
        $region64: #{tpu_custom_call.1} parent=39 // pred_fallthru
          _
        // Predicated region
        $region65: #{tpu_custom_call.1} parent=39 // pred_check
          %p490 = pneg %p200
        $region66: #{tpu_custom_call.1} parent=39 // pred_check_branch
          %492 = sbr.rel (%p490) target = $region68
        $region67: #{tpu_custom_call.1} parent=39 // pred_region
          %p493 = scmp.lt.s32.totalorder %s24, 1
          %s494 = scalar_select %p493, %s24, 1
          %s495 = smul.addr %s494, 8
          %s496 = scalar_lea.vmem %s6, %s495
        $region68: #{tpu_custom_call.1} parent=39 // pred_fallthru
          _
        // Predicated region
        $region69: #{tpu_custom_call.1} parent=39 // pred_check
          %p497 = pneg %p226
        $region70: #{tpu_custom_call.1} parent=39 // pred_check_branch
          %499 = sbr.rel (%p497) target = $region72
        $region71: #{tpu_custom_call.1} parent=39 // pred_region
          %p500 = scmp.lt.s32.totalorder %s24, 1
          %s501 = scalar_select %p500, %s24, 1
          %s502 = smul.addr %s501, 8
          %s503 = scalar_lea.vmem %s7, %s502
        $region72: #{tpu_custom_call.1} parent=39 // pred_fallthru
          _
        // Predicated region
        $region73: #{tpu_custom_call.1} parent=39 // pred_check
          %p504 = pneg %p252
        $region74: #{tpu_custom_call.1} parent=39 // pred_check_branch
          %506 = sbr.rel (%p504) target = $region76
        $region75: #{tpu_custom_call.1} parent=39 // pred_region
          %p507 = scmp.lt.s32.totalorder %s24, 1
          %s508 = scalar_select %p507, %s24, 1
          %s509 = smul.addr %s508, 8
          %s510 = scalar_lea.vmem %s8, %s509
        $region76: #{tpu_custom_call.1} parent=39 // pred_fallthru
          _
      $region40: #{tpu_custom_call.1} parent=5 // pred_fallthru
        _
      %p511 = scmp.le.s32.totalorder 1, %s24
      %p512 = scmp.lt.s32.totalorder %s24, 3
      %p513 = pnand %p511, %p512
      %p514 = pneg %p513
      // Predicated region
      $region77: #{tpu_custom_call.1} parent=5 // pred_check
        _
      $region78: #{tpu_custom_call.1} parent=5 // pred_check_branch
        %516 = sbr.rel (%p513) target = $region80
      $region79: #{tpu_custom_call.1} parent=5 // pred_region
        %s517 = ssub.s32 %s24, 1
        %p518 = scmp.lt.s32.totalorder %s29, 1
        %s519 = scalar_select %p518, %s29, 1
        %s520 = smul.addr %s519, 2
        %s521 = smul.addr %s520, 4
        %s522 = scalar_lea.vmem %s0, %s521
        %p523 = pneg %p50
        %p524 = pneg %p47
        %p525 = scmp.lt.s32.totalorder %s29, 1
        %s526 = scalar_select %p525, %s29, 1
        %s527 = smul.addr %s526, 4
        %s528 = scalar_lea.vmem %s1, %s527
        %p529 = pneg %p76
        %p530 = pneg %p73
        %p531 = scmp.lt.s32.totalorder %s29, 1
        %s532 = scalar_select %p531, %s29, 1
        %s533 = smul.addr %s532, 4
        %s534 = scalar_lea.vmem %s2, %s533
        %p535 = pneg %p102
        %p536 = pneg %p99
        %p537 = scmp.lt.s32.totalorder %s29, 1
        %s538 = scalar_select %p537, %s29, 1
        %s539 = smul.addr %s538, 4
        %s540 = scalar_lea.vmem %s3, %s539
        %p541 = pneg %p128
        %p542 = pneg %p125
        %p543 = scmp.lt.s32.totalorder %s29, 1
        %s544 = scalar_select %p543, %s29, 1
        %s545 = smul.addr %s544, 4
        %s546 = scalar_lea.vmem %s4, %s545
        %p547 = pneg %p154
        %p548 = pneg %p151
        %p549 = scmp.lt.s32.totalorder %s29, 1
        %s550 = scalar_select %p549, %s29, 1
        %s551 = smul.addr %s550, 8
        %s552 = scalar_lea.vmem %s5, %s551
        %p553 = pneg %p180
        %p554 = pneg %p177
        %p555 = scmp.lt.s32.totalorder %s29, 1
        %s556 = scalar_select %p555, %s29, 1
        %s557 = smul.addr %s556, 8
        %s558 = scalar_lea.vmem %s6, %s557
        %p559 = pneg %p206
        %p560 = pneg %p203
        %p561 = scmp.lt.s32.totalorder %s29, 1
        %s562 = scalar_select %p561, %s29, 1
        %s563 = smul.addr %s562, 8
        %s564 = scalar_lea.vmem %s7, %s563
        %p565 = pneg %p232
        %p566 = pneg %p229
        %p567 = scmp.lt.s32.totalorder %s29, 1
        %s568 = scalar_select %p567, %s29, 1
        %s569 = smul.addr %s568, 8
        %s570 = scalar_lea.vmem %s8, %s569
        %p571 = pneg %p258
        %p572 = pneg %p255
        %p573 = pneg %p279
        %p574 = pneg %p276
        %p575 = pneg %p300
        %p576 = pneg %p297
        %p577 = pneg %p321
        %p578 = pneg %p318
        %p579 = pneg %p342
        %p580 = pneg %p339
        %p581 = pneg %p363
        %p582 = pneg %p360
        %p583 = pneg %p384
        %p584 = pneg %p381
        %p585 = pneg %p410
        %p586 = pneg %p407
        %s587 = sand.u32 %s397, 1
        %s588 = scalar_lea.sflag [#allocation3], %s587
        %s589 = sand.u32 %s397, 1
        %s590 = smul.addr %s589, 16
        %s591 = scalar_lea.vmem [#allocation2], %s590
        %p592 = scmp.lt.s32.totalorder %s29, 1
        %s593 = scalar_select %p592, %s29, 1
        %s594 = smul.addr %s593, 2
        %s595 = smul.addr %s594, 4
        %s596 = scalar_lea.vmem %s0, %s595
        %p597 = scmp.lt.s32.totalorder %s29, 1
        %s598 = scalar_select %p597, %s29, 1
        %s599 = smul.addr %s598, 4
        %s600 = scalar_lea.vmem %s1, %s599
        %p601 = scmp.lt.s32.totalorder %s29, 1
        %s602 = scalar_select %p601, %s29, 1
        %s603 = smul.addr %s602, 4
        %s604 = scalar_lea.vmem %s2, %s603
        %p605 = scmp.lt.s32.totalorder %s29, 1
        %s606 = scalar_select %p605, %s29, 1
        %s607 = smul.addr %s606, 4
        %s608 = scalar_lea.vmem %s3, %s607
        %p609 = scmp.lt.s32.totalorder %s29, 1
        %s610 = scalar_select %p609, %s29, 1
        %s611 = smul.addr %s610, 4
        %s612 = scalar_lea.vmem %s4, %s611
        %p613 = scmp.lt.s32.totalorder %s29, 1
        %s614 = scalar_select %p613, %s29, 1
        %s615 = smul.addr %s614, 8
        %s616 = scalar_lea.vmem %s5, %s615
        %p617 = scmp.lt.s32.totalorder %s29, 1
        %s618 = scalar_select %p617, %s29, 1
        %s619 = smul.addr %s618, 8
        %s620 = scalar_lea.vmem %s6, %s619
        %p621 = scmp.lt.s32.totalorder %s29, 1
        %s622 = scalar_select %p621, %s29, 1
        %s623 = smul.addr %s622, 8
        %s624 = scalar_lea.vmem %s7, %s623
        %p625 = scmp.lt.s32.totalorder %s29, 1
        %s626 = scalar_select %p625, %s29, 1
        %s627 = smul.addr %s626, 8
        %s628 = scalar_lea.vmem %s8, %s627
        %v630 = vld [vmem:[%s596] sm:$0xff]
        %v631 = vlaneseq
        %v632 = vand.u32 %v631, 127
        %v633 = vadd.s32 %v632, 128
        %vm634 = vcmp.lt.s32.totalorder %v632, 0
        %v635 = vsub.s32 0, %v632
        %v636 = vsel %vm634, %v635, %v632
        %v637 = vshrl.u32 %v636, 4
        %v638 = vand.u32 %v636, 15
        %v639 = vsub.s32 0, %v638
        %v640 = vsel %vm634, %v639, %v638
        %vm641 = vcmp.lt.s32.totalorder %v633, 0
        %v642 = vsub.s32 0, %v633
        %v643 = vsel %vm641, %v642, %v633
        %v644 = vshrl.u32 %v643, 4
        %v645 = vand.u32 %v643, 15
        %v646 = vsub.s32 0, %v645
        %v647 = vsel %vm641, %v646, %v645
        %vm648 = vcmp.ne.s32.totalorder %v640, 0
        %vm649 = vcmp.ne.s32.totalorder %v647, 0
        %vm650 = vcmp.lt.s32.totalorder %v640, 0
        %vm651 = vcmp.lt.s32.totalorder %v647, 0
        %vm652 = vmand %vm650, %vm648
        %vm653 = vmand %vm651, %vm649
        %v654 = vadd.s32 %v640, 16
        %v655 = vadd.s32 %v647, 16
        %v656 = vsel %vm652, %v654, %v640
        %v657 = vsel %vm653, %v655, %v647
        %vm658 = vcmp.ge.s32.totalorder %v632, 16
        %vm659 = vcmp.ge.s32.totalorder %v633, 16
        %vm660 = vcmp.lt.s32.totalorder %v632, 240
        %vm661 = vcmp.lt.s32.totalorder %v633, 240
        %vm662 = vcmp.ge.s32.totalorder %v656, 1
        %vm663 = vcmp.ge.s32.totalorder %v657, 1
        %vm664 = vcmp.lt.s32.totalorder %v656, 15
        %vm665 = vcmp.lt.s32.totalorder %v657, 15
        %vm666 = vmand %vm658, %vm662
        %vm667 = vmand %vm659, %vm663
        %vm668 = vmand %vm658, %vm664
        %vm669 = vmand %vm659, %vm665
        %vm670 = vmand %vm660, %vm662
        %vm671 = vmand %vm661, %vm663
        %vm672 = vmand %vm660, %vm664
        %vm673 = vmand %vm661, %vm665
        %v674 = vld [vmem:[%s600] sm:$0xf]
        %676 = vset.pattern.permute.xlu0 0
        %677 = vperm.xlu0 %676, %v674
        %v678 = vpop.permute.xlu0 %677
        %v680 = vunpack.c.l.s4 839922192
        %v681 = vunpack.c.0.s8 %v680
        %v682 = vlaneseq
        %v683 = vshrl.u32 %v682, 7
        %v684 = vsub.s32 %v681, %v683
        %v685 = vrot.slane %v678, %v684
        %v687 = vmul.f32 %v630, %v685
        %v688 = vld [vmem:[%s604] sm:$0xf]
        %690 = vset.pattern.permute.xlu0 0
        %691 = vperm.xlu0 %690, %v688
        %v692 = vpop.permute.xlu0 %691
        %v694 = vunpack.c.l.s4 839922192
        %v695 = vunpack.c.0.s8 %v694
        %v696 = vlaneseq
        %v697 = vshrl.u32 %v696, 7
        %v698 = vsub.s32 %v695, %v697
        %v699 = vrot.slane %v692, %v698
        %v701 = vadd.f32 %v687, %v699
        %vm702 = vcmp.gt.f32.partialorder %v701, 0.0
        %v703 = vmul.f32 %v701, 0.2
        %v704 = vsel %vm702, %v701, %v703
        %v705 = vld [vmem:[%s608] sm:$0xf]
        %707 = vset.pattern.permute.xlu0 0
        %708 = vperm.xlu0 %707, %v705
        %v709 = vpop.permute.xlu0 %708
        %v711 = vunpack.c.l.s4 839922192
        %v712 = vunpack.c.0.s8 %v711
        %v713 = vlaneseq
        %v714 = vshrl.u32 %v713, 7
        %v715 = vsub.s32 %v712, %v714
        %v716 = vrot.slane %v709, %v715
        %v718 = vmul.f32 %v704, %v716
        %v719 = vld [vmem:[%s612] sm:$0xf]
        %721 = vset.pattern.permute.xlu0 0
        %722 = vperm.xlu0 %721, %v719
        %v723 = vpop.permute.xlu0 %722
        %v725 = vunpack.c.l.s4 839922192
        %v726 = vunpack.c.0.s8 %v725
        %v727 = vlaneseq
        %v728 = vshrl.u32 %v727, 7
        %v729 = vsub.s32 %v726, %v728
        %v730 = vrot.slane %v723, %v729
        %v732 = vadd.f32 %v718, %v730
        %vm733 = vcmp.gt.f32.partialorder %v732, 0.0
        %v734 = vmul.f32 %v732, 0.2
        %v735 = vsel %vm733, %v732, %v734
        %v737 = vcombine.high %v735, %v735
        %739 = vrot.lane.b32.xlu0 %v735, 17
        %v740 = vpop.permute.xlu0 %739
        %741 = vrot.lane.b32.xlu0 %v737, 17
        %v742 = vpop.permute.xlu0 %741
        %vm743 = vcmp.lt.s32.totalorder %v632, 17
        %v744 = vsel %vm743, %v740, %v742
        %v745 = vsel %vm743, %v742, %v740
        %v746 = vsel %vm666, 1, 0
        %v747 = vsel %vm667, 1, 0
        %vm748 = vcmp.eq.s32.totalorder %v746, 1
        %vm749 = vcmp.eq.s32.totalorder %v747, 1
        %v750 = vsel %vm748, %v745, 0.0
        %v751 = vsel %vm749, %v744, 0.0
        %752 = vrot.lane.b32.xlu0 %v735, 16
        %v753 = vpop.permute.xlu0 %752
        %754 = vrot.lane.b32.xlu0 %v737, 16
        %v755 = vpop.permute.xlu0 %754
        %vm756 = vcmp.lt.s32.totalorder %v632, 16
        %v757 = vsel %vm756, %v753, %v755
        %v758 = vsel %vm756, %v755, %v753
        %v759 = vsel %vm658, 1, 0
        %v760 = vsel %vm659, 1, 0
        %vm761 = vcmp.eq.s32.totalorder %v759, 1
        %vm762 = vcmp.eq.s32.totalorder %v760, 1
        %v763 = vsel %vm761, %v758, 0.0
        %v764 = vsel %vm762, %v757, 0.0
        %765 = vrot.lane.b32.xlu0 %v735, 15
        %v766 = vpop.permute.xlu0 %765
        %767 = vrot.lane.b32.xlu0 %v737, 15
        %v768 = vpop.permute.xlu0 %767
        %vm769 = vcmp.lt.s32.totalorder %v632, 15
        %v770 = vsel %vm769, %v766, %v768
        %v771 = vsel %vm769, %v768, %v766
        %v772 = vsel %vm668, 1, 0
        %v773 = vsel %vm669, 1, 0
        %vm774 = vcmp.eq.s32.totalorder %v772, 1
        %vm775 = vcmp.eq.s32.totalorder %v773, 1
        %v776 = vsel %vm774, %v771, 0.0
        %v777 = vsel %vm775, %v770, 0.0
        %778 = vrot.lane.b32.xlu0 %v735, 1
        %v779 = vpop.permute.xlu0 %778
        %780 = vrot.lane.b32.xlu0 %v737, 1
        %v781 = vpop.permute.xlu0 %780
        %vm782 = vcmp.lt.s32.totalorder %v632, 1
        %v783 = vsel %vm782, %v779, %v781
        %v784 = vsel %vm782, %v781, %v779
        %v785 = vsel %vm662, 1, 0
        %v786 = vsel %vm663, 1, 0
        %vm787 = vcmp.eq.s32.totalorder %v785, 1
        %vm788 = vcmp.eq.s32.totalorder %v786, 1
        %v789 = vsel %vm787, %v784, 0.0
        %v790 = vsel %vm788, %v783, 0.0
        %791 = vrot.lane.b32.xlu0 %v735, 127
        %v792 = vpop.permute.xlu0 %791
        %793 = vrot.lane.b32.xlu0 %v737, 127
        %v794 = vpop.permute.xlu0 %793
        %vm795 = vcmp.lt.s32.totalorder %v632, 127
        %v796 = vsel %vm795, %v792, %v794
        %v797 = vsel %vm795, %v794, %v792
        %v798 = vsel %vm664, 1, 0
        %v799 = vsel %vm665, 1, 0
        %vm800 = vcmp.eq.s32.totalorder %v798, 1
        %vm801 = vcmp.eq.s32.totalorder %v799, 1
        %v802 = vsel %vm800, %v796, 0.0
        %v803 = vsel %vm801, %v797, 0.0
        %804 = vrot.lane.b32.xlu0 %v735, 113
        %v805 = vpop.permute.xlu0 %804
        %806 = vrot.lane.b32.xlu0 %v737, 113
        %v807 = vpop.permute.xlu0 %806
        %vm808 = vcmp.lt.s32.totalorder %v632, 113
        %v809 = vsel %vm808, %v805, %v807
        %v810 = vsel %vm808, %v807, %v805
        %v811 = vsel %vm670, 1, 0
        %v812 = vsel %vm671, 1, 0
        %vm813 = vcmp.eq.s32.totalorder %v811, 1
        %vm814 = vcmp.eq.s32.totalorder %v812, 1
        %v815 = vsel %vm813, %v809, 0.0
        %v816 = vsel %vm814, %v810, 0.0
        %817 = vrot.lane.b32.xlu0 %v735, 112
        %v818 = vpop.permute.xlu0 %817
        %819 = vrot.lane.b32.xlu0 %v737, 112
        %v820 = vpop.permute.xlu0 %819
        %vm821 = vcmp.lt.s32.totalorder %v632, 112
        %v822 = vsel %vm821, %v818, %v820
        %v823 = vsel %vm821, %v820, %v818
        %v824 = vsel %vm660, 1, 0
        %v825 = vsel %vm661, 1, 0
        %vm826 = vcmp.eq.s32.totalorder %v824, 1
        %vm827 = vcmp.eq.s32.totalorder %v825, 1
        %v828 = vsel %vm826, %v822, 0.0
        %v829 = vsel %vm827, %v823, 0.0
        %830 = vrot.lane.b32.xlu0 %v735, 111
        %v831 = vpop.permute.xlu0 %830
        %832 = vrot.lane.b32.xlu0 %v737, 111
        %v833 = vpop.permute.xlu0 %832
        %vm834 = vcmp.lt.s32.totalorder %v632, 111
        %v835 = vsel %vm834, %v831, %v833
        %v836 = vsel %vm834, %v833, %v831
        %v837 = vsel %vm672, 1, 0
        %v838 = vsel %vm673, 1, 0
        %vm839 = vcmp.eq.s32.totalorder %v837, 1
        %vm840 = vcmp.eq.s32.totalorder %v838, 1
        %v841 = vsel %vm839, %v835, 0.0
        %v842 = vsel %vm840, %v836, 0.0
        %v845 = vrot.slane %v763, 4
        %v846 = vrot.slane %v764, 4
        %v851 = vrot.slane %v789, 4
        %v852 = vrot.slane %v790, 4
        %v857 = vrot.slane %v802, 4
        %v858 = vrot.slane %v803, 4
        %v863 = vrot.slane %v828, 4
        %v864 = vrot.slane %v829, 4
        %vm867 = vcmask 1043456
        %v868 = vsel %vm867, %v750, %v845
        %v869 = vsel %vm867, %v751, %v846
        %v870 = vsel %vm867, %v776, %v851
        %v871 = vsel %vm867, %v777, %v852
        %v872 = vsel %vm867, %v735, %v857
        %v873 = vsel %vm867, %v737, %v858
        %v874 = vsel %vm867, %v815, %v863
        %v875 = vsel %vm867, %v816, %v864
        %v876 = vpack.c.bf16 %v870, %v868
        %v877 = vpack.c.bf16 %v871, %v869
        %v878 = vpack.c.bf16 %v874, %v872
        %v879 = vpack.c.bf16 %v875, %v873
        %v880 = vpack.c.bf16 %v841, %v841
        %v881 = vpack.c.bf16 %v842, %v842
        %v882 = vld [vmem:[%s9] sm:$0xf]
        %v883 = vld [vmem:[%s10] sm:$0xff]
        %885 = vset.pattern.permute.xlu0 0
        %886 = vperm.xlu0 %885, %v883
        %v887 = vpop.permute.xlu0 %886
        %vm889 = vcmask 293888
        %v891 = vsel %vm889, %v882, 0
        %vm893 = vcmask 1041408
        %v895 = vsel %vm893, %v880, 0
        %v898 = vsel %vm893, %v881, 0
        %900 = vmatprep.subr.bf16.mxu0 0
        %901 = vmatpush1.bf16.msra.mxu0 0
        %902 = vmatprep.subr.bf16.mxu0 0
        %903 = vmatpush1.bf16.msra.mxu0 0
        %904 = vmatprep.subr.bf16.mxu0 0
        %905 = vmatpush1.bf16.msra.mxu0 0
        %906 = vmatprep.subr.bf16.mxu0 0
        %907 = vmatpush1.bf16.msra.mxu0 0
        %908 = vmatprep.subr.bf16.mxu0 0
        %909 = vmatpush1.bf16.msra.mxu0 0
        %910 = vmatprep.subr.bf16.mxu0 %v898
        %911 = vmatpush1.bf16.msra.mxu0 %v895
        %912 = vmatprep.subr.bf16.mxu0 %v879
        %913 = vmatpush1.bf16.msra.mxu0 %v878
        %914 = vmatprep.subr.bf16.mxu0 %v877
        %915 = vmatpush1.bf16.msra.mxu0 %v876
        %916 = vmatprep.subr.bf16.mxu0 0
        %917 = vmatpush2.bf16.msra.mxu0 0
        %918 = vmatprep.subr.bf16.mxu0 0
        %919 = vmatpush2.bf16.msra.mxu0 0
        %920 = vmatprep.subr.bf16.mxu0 0
        %921 = vmatpush2.bf16.msra.mxu0 0
        %922 = vmatprep.subr.bf16.mxu0 0
        %923 = vmatpush2.bf16.msra.mxu0 0
        %924 = vmatprep.subr.bf16.mxu0 0
        %925 = vmatpush2.bf16.msra.mxu0 0
        %926 = vmatprep.subr.bf16.mxu0 0
        %927 = vmatpush2.bf16.msra.mxu0 0
        %928 = vmatprep.subr.bf16.mxu0 0
        %929 = vmatpush2.bf16.msra.mxu0 0
        %930 = vmatprep.subr.bf16.mxu0 0
        %931 = vmatpush2.bf16.msra.mxu0 0
        %932 = vmatprep.mubr.bf16.mxu0 0
        %933 = vmatmul.mubr.bf16.gmra.mxu0 %v891
        %v934 = vpop.f32.mrf.mxu0
        %v935 = vadd.f32 %v887, %v934
        %v936 = vpop.f32.mrf.mxu0
        %v937 = vadd.f32 %v887, %v936
        %v938 = vpop.f32.mrf.mxu0
        %v939 = vpop.f32.mrf.mxu0
        %940 = vdwg.mxu0
        %v941 = vld [vmem:[%s616] sm:$0xff]
        %943 = vset.pattern.permute.xlu0 0
        %944 = vperm.xlu0 %943, %v941
        %v945 = vpop.permute.xlu0 %944
        %v947 = vmul.f32 %v935, %v945
        %v948 = vmul.f32 %v937, %v945
        %v949 = vld [vmem:[%s620] sm:$0xff]
        %951 = vset.pattern.permute.xlu0 0
        %952 = vperm.xlu0 %951, %v949
        %v953 = vpop.permute.xlu0 %952
        %v955 = vadd.f32 %v947, %v953
        %v956 = vadd.f32 %v948, %v953
        %vm957 = vcmp.gt.f32.partialorder %v955, 0.0
        %vm958 = vcmp.gt.f32.partialorder %v956, 0.0
        %v959 = vmul.f32 %v955, 0.2
        %v960 = vmul.f32 %v956, 0.2
        %v961 = vsel %vm957, %v955, %v959
        %v962 = vsel %vm958, %v956, %v960
        %v963 = vld [vmem:[%s624] sm:$0xff]
        %965 = vset.pattern.permute.xlu0 0
        %966 = vperm.xlu0 %965, %v963
        %v967 = vpop.permute.xlu0 %966
        %v969 = vmul.f32 %v961, %v967
        %v970 = vmul.f32 %v962, %v967
        %v971 = vld [vmem:[%s628] sm:$0xff]
        %973 = vset.pattern.permute.xlu0 0
        %974 = vperm.xlu0 %973, %v971
        %v975 = vpop.permute.xlu0 %974
        %v977 = vadd.f32 %v969, %v975
        %v978 = vadd.f32 %v970, %v975
        %vm979 = vcmp.gt.f32.partialorder %v977, 0.0
        %vm980 = vcmp.gt.f32.partialorder %v978, 0.0
        %v981 = vmul.f32 %v977, 0.2
        %v982 = vmul.f32 %v978, 0.2
        %v983 = vsel %vm979, %v977, %v981
        %v984 = vsel %vm980, %v978, %v982
        %985 = vrot.lane.b32.xlu0 %v983, 17
        %v986 = vpop.permute.xlu0 %985
        %987 = vrot.lane.b32.xlu0 %v984, 17
        %v988 = vpop.permute.xlu0 %987
        %v989 = vsel %vm743, %v986, %v988
        %v990 = vsel %vm743, %v988, %v986
        %v991 = vsel %vm748, %v990, 0.0
        %v992 = vsel %vm749, %v989, 0.0
        %993 = vrot.lane.b32.xlu0 %v983, 16
        %v994 = vpop.permute.xlu0 %993
        %995 = vrot.lane.b32.xlu0 %v984, 16
        %v996 = vpop.permute.xlu0 %995
        %v997 = vsel %vm756, %v994, %v996
        %v998 = vsel %vm756, %v996, %v994
        %v999 = vsel %vm761, %v998, 0.0
        %v1000 = vsel %vm762, %v997, 0.0
        %1001 = vrot.lane.b32.xlu0 %v983, 15
        %v1002 = vpop.permute.xlu0 %1001
        %1003 = vrot.lane.b32.xlu0 %v984, 15
        %v1004 = vpop.permute.xlu0 %1003
        %v1005 = vsel %vm769, %v1002, %v1004
        %v1006 = vsel %vm769, %v1004, %v1002
        %v1007 = vsel %vm774, %v1006, 0.0
        %v1008 = vsel %vm775, %v1005, 0.0
        %1009 = vrot.lane.b32.xlu0 %v983, 1
        %v1010 = vpop.permute.xlu0 %1009
        %1011 = vrot.lane.b32.xlu0 %v984, 1
        %v1012 = vpop.permute.xlu0 %1011
        %v1013 = vsel %vm782, %v1010, %v1012
        %v1014 = vsel %vm782, %v1012, %v1010
        %v1015 = vsel %vm787, %v1014, 0.0
        %v1016 = vsel %vm788, %v1013, 0.0
        %1017 = vrot.lane.b32.xlu0 %v983, 127
        %v1018 = vpop.permute.xlu0 %1017
        %1019 = vrot.lane.b32.xlu0 %v984, 127
        %v1020 = vpop.permute.xlu0 %1019
        %v1021 = vsel %vm795, %v1018, %v1020
        %v1022 = vsel %vm795, %v1020, %v1018
        %v1023 = vsel %vm800, %v1021, 0.0
        %v1024 = vsel %vm801, %v1022, 0.0
        %1025 = vrot.lane.b32.xlu0 %v983, 113
        %v1026 = vpop.permute.xlu0 %1025
        %1027 = vrot.lane.b32.xlu0 %v984, 113
        %v1028 = vpop.permute.xlu0 %1027
        %v1029 = vsel %vm808, %v1026, %v1028
        %v1030 = vsel %vm808, %v1028, %v1026
        %v1031 = vsel %vm813, %v1029, 0.0
        %v1032 = vsel %vm814, %v1030, 0.0
        %1033 = vrot.lane.b32.xlu0 %v983, 112
        %v1034 = vpop.permute.xlu0 %1033
        %1035 = vrot.lane.b32.xlu0 %v984, 112
        %v1036 = vpop.permute.xlu0 %1035
        %v1037 = vsel %vm821, %v1034, %v1036
        %v1038 = vsel %vm821, %v1036, %v1034
        %v1039 = vsel %vm826, %v1037, 0.0
        %v1040 = vsel %vm827, %v1038, 0.0
        %1041 = vrot.lane.b32.xlu0 %v983, 111
        %v1042 = vpop.permute.xlu0 %1041
        %1043 = vrot.lane.b32.xlu0 %v984, 111
        %v1044 = vpop.permute.xlu0 %1043
        %v1045 = vsel %vm834, %v1042, %v1044
        %v1046 = vsel %vm834, %v1044, %v1042
        %v1047 = vsel %vm839, %v1045, 0.0
        %v1048 = vsel %vm840, %v1046, 0.0
        %v1049 = vpack.c.bf16 %v999, %v991
        %v1050 = vpack.c.bf16 %v1000, %v992
        %v1051 = vpack.c.bf16 %v1015, %v1007
        %v1052 = vpack.c.bf16 %v1016, %v1008
        %v1053 = vpack.c.bf16 %v1023, %v983
        %v1054 = vpack.c.bf16 %v1024, %v984
        %v1055 = vpack.c.bf16 %v1039, %v1031
        %v1056 = vpack.c.bf16 %v1040, %v1032
        %v1057 = vpack.c.bf16 %v1047, %v1047
        %v1058 = vpack.c.bf16 %v1048, %v1048
        %v1059 = vld [vmem:[%s11] sm:$0xf]
        %v1060 = vld [vmem:[%s12] sm:$0xff]
        %1062 = vset.pattern.permute.xlu0 0
        %1063 = vperm.xlu0 %1062, %v1060
        %v1064 = vpop.permute.xlu0 %1063
        %vm1066 = vcmask 588800
        %v1068 = vsel %vm1066, %v1059, 0
        %v1071 = vsel %vm867, %v1057, 0
        %v1074 = vsel %vm867, %v1058, 0
        %1076 = vmatprep.subr.bf16.mxu0 0
        %1077 = vmatpush1.bf16.msra.mxu0 0
        %1078 = vmatprep.subr.bf16.mxu0 0
        %1079 = vmatpush1.bf16.msra.mxu0 0
        %1080 = vmatprep.subr.bf16.mxu0 0
        %1081 = vmatpush1.bf16.msra.mxu0 0
        %1082 = vmatprep.subr.bf16.mxu0 %v1074
        %1083 = vmatpush1.bf16.msra.mxu0 %v1071
        %1084 = vmatprep.subr.bf16.mxu0 %v1056
        %1085 = vmatpush1.bf16.msra.mxu0 %v1055
        %1086 = vmatprep.subr.bf16.mxu0 %v1054
        %1087 = vmatpush1.bf16.msra.mxu0 %v1053
        %1088 = vmatprep.subr.bf16.mxu0 %v1052
        %1089 = vmatpush1.bf16.msra.mxu0 %v1051
        %1090 = vmatprep.subr.bf16.mxu0 %v1050
        %1091 = vmatpush1.bf16.msra.mxu0 %v1049
        %1092 = vmatprep.subr.bf16.mxu0 0
        %1093 = vmatpush2.bf16.msra.mxu0 0
        %1094 = vmatprep.subr.bf16.mxu0 0
        %1095 = vmatpush2.bf16.msra.mxu0 0
        %1096 = vmatprep.subr.bf16.mxu0 0
        %1097 = vmatpush2.bf16.msra.mxu0 0
        %1098 = vmatprep.subr.bf16.mxu0 0
        %1099 = vmatpush2.bf16.msra.mxu0 0
        %1100 = vmatprep.subr.bf16.mxu0 0
        %1101 = vmatpush2.bf16.msra.mxu0 0
        %1102 = vmatprep.subr.bf16.mxu0 0
        %1103 = vmatpush2.bf16.msra.mxu0 0
        %1104 = vmatprep.subr.bf16.mxu0 0
        %1105 = vmatpush2.bf16.msra.mxu0 0
        %1106 = vmatprep.subr.bf16.mxu0 0
        %1107 = vmatpush2.bf16.msra.mxu0 0
        %1108 = vmatprep.mubr.bf16.mxu0 0
        %1109 = vmatmul.mubr.bf16.gmra.mxu0 %v1068
        %v1110 = vpop.f32.mrf.mxu0
        %v1111 = vadd.f32 %v1064, %v1110
        %v1112 = vpop.f32.mrf.mxu0
        %v1113 = vadd.f32 %v1064, %v1112
        %v1114 = vpop.f32.mrf.mxu0
        %v1115 = vpop.f32.mrf.mxu0
        %1116 = vdwg.mxu0
        %v1117 = vld [vmem:[%s13] sm:$0xf]
        %v1118 = vunpack.c.l.bf16 %v1117
        %v1119 = vld [vmem:[%s14] sm:$0xff]
        %1121 = vset.pattern.permute.xlu0 0
        %1122 = vperm.xlu0 %1121, %v1119
        %v1123 = vpop.permute.xlu0 %1122
        %v1126 = vcombine.high %v630, %v630
        %vm1127 = vcmask 31744
        %v1129 = vsel %vm1127, %v1118, 0
        %v1131 = vsel %vm867, %v630, 0
        %v1133 = vsel %vm867, %v1126, 0
        %1135 = vmatprep.subr.mxu0 0.0
        %1136 = vmatpush1.msra.mxu0 0.0
        %1137 = vmatprep.subr.mxu0 0.0
        %1138 = vmatpush1.msra.mxu0 0.0
        %1139 = vmatprep.subr.mxu0 0.0
        %1140 = vmatpush1.msra.mxu0 0.0
        %1141 = vmatprep.subr.mxu0 0.0
        %1142 = vmatpush1.msra.mxu0 0.0
        %1143 = vmatprep.subr.mxu0 0.0
        %1144 = vmatpush1.msra.mxu0 0.0
        %1145 = vmatprep.subr.mxu0 0.0
        %1146 = vmatpush1.msra.mxu0 0.0
        %1147 = vmatprep.subr.mxu0 0.0
        %1148 = vmatpush1.msra.mxu0 0.0
        %1149 = vmatprep.subr.mxu0 0.0
        %1150 = vmatpush1.msra.mxu0 0.0
        %1151 = vmatprep.subr.mxu0 0.0
        %1152 = vmatpush1.msra.mxu0 0.0
        %1153 = vmatprep.subr.mxu0 0.0
        %1154 = vmatpush1.msra.mxu0 0.0
        %1155 = vmatprep.subr.mxu0 0.0
        %1156 = vmatpush1.msra.mxu0 0.0
        %1157 = vmatprep.subr.mxu0 0.0
        %1158 = vmatpush1.msra.mxu0 0.0
        %1159 = vmatprep.subr.mxu0 0.0
        %1160 = vmatpush1.msra.mxu0 0.0
        %1161 = vmatprep.subr.mxu0 0.0
        %1162 = vmatpush1.msra.mxu0 0.0
        %1163 = vmatprep.subr.mxu0 0.0
        %1164 = vmatpush1.msra.mxu0 0.0
        %1165 = vmatprep.subr.mxu0 %v1133
        %1166 = vmatpush1.msra.mxu0 %v1131
        %1167 = vmatprep.subr.mxu0 0.0
        %1168 = vmatpush2.msra.mxu0 0.0
        %1169 = vmatprep.subr.mxu0 0.0
        %1170 = vmatpush2.msra.mxu0 0.0
        %1171 = vmatprep.subr.mxu0 0.0
        %1172 = vmatpush2.msra.mxu0 0.0
        %1173 = vmatprep.subr.mxu0 0.0
        %1174 = vmatpush2.msra.mxu0 0.0
        %1175 = vmatprep.subr.mxu0 0.0
        %1176 = vmatpush2.msra.mxu0 0.0
        %1177 = vmatprep.subr.mxu0 0.0
        %1178 = vmatpush2.msra.mxu0 0.0
        %1179 = vmatprep.subr.mxu0 0.0
        %1180 = vmatpush2.msra.mxu0 0.0
        %1181 = vmatprep.subr.mxu0 0.0
        %1182 = vmatpush2.msra.mxu0 0.0
        %1183 = vmatprep.subr.mxu0 0.0
        %1184 = vmatpush2.msra.mxu0 0.0
        %1185 = vmatprep.subr.mxu0 0.0
        %1186 = vmatpush2.msra.mxu0 0.0
        %1187 = vmatprep.subr.mxu0 0.0
        %1188 = vmatpush2.msra.mxu0 0.0
        %1189 = vmatprep.subr.mxu0 0.0
        %1190 = vmatpush2.msra.mxu0 0.0
        %1191 = vmatprep.subr.mxu0 0.0
        %1192 = vmatpush2.msra.mxu0 0.0
        %1193 = vmatprep.subr.mxu0 0.0
        %1194 = vmatpush2.msra.mxu0 0.0
        %1195 = vmatprep.subr.mxu0 0.0
        %1196 = vmatpush2.msra.mxu0 0.0
        %1197 = vmatprep.subr.mxu0 0.0
        %1198 = vmatpush2.msra.mxu0 0.0
        %1199 = vmatprep.mubr.f32.mxu0 0.0
        %1200 = vmatmul.mubr.f32.gmra.mxu0 %v1129
        %v1201 = vpop.f32.mrf.mxu0
        %v1202 = vadd.f32 %v1123, %v1201
        %v1203 = vpop.f32.mrf.mxu0
        %v1204 = vadd.f32 %v1123, %v1203
        %1205 = vdwg.mxu0
        %v1206 = vadd.f32 %v1202, %v1111
        %v1207 = vadd.f32 %v1204, %v1113
        %1208 = vst [vmem:[%s591] sm:$0xff] %v1206
        %1209 = vst [vmem:[%s591 + $0x8] sm:$0xff] %v1207
        %s1210 = sand.u32 %s397, 1
        %s1211 = scalar_lea.sflag [#allocation3], %s1210
        %s1212 = sand.u32 %s397, 1
        %s1213 = smul.addr %s1212, 16
        %s1214 = scalar_lea.vmem [#allocation2], %s1213
        // Predicated region
        $region81: #{tpu_custom_call.1} parent=79 // pred_check
          %p1215 = pneg %p407
        $region82: #{tpu_custom_call.1} parent=79 // pred_check_branch
          %1217 = sbr.rel (%p1215) target = $region84
        $region83: #{tpu_custom_call.1} parent=79 // pred_region
          %s1219 = ssub.s32 256, 256
          %1220 = vsyncadd %s1211, %s1219
          %s1221 = smul.addr %s29, 2
          %s1222 = smul.addr %s1221, 128
          %s1223 = scalar_lea.hbm %s15, %s1222
          %s1225 = sshll.u32 %s1214, 4
          %s1226 = int_to_ptr.vmem [resolvable:$true] %s1225
          %1228 = dma.vmem_to_hbm [thread:$0]  %s1226, 256, %s1223, %s1211
        $region84: #{tpu_custom_call.1} parent=79 // pred_fallthru
          _
      $region80: #{tpu_custom_call.1} parent=5 // pred_fallthru
        _
      %p1229 = scmp.le.s32.totalorder 2, %s24
      // Predicated region
      $region85: #{tpu_custom_call.1} parent=5 // pred_check
        %p1230 = pneg %p1229
      $region86: #{tpu_custom_call.1} parent=5 // pred_check_branch
        %1232 = sbr.rel (%p1230) target = $region88
      $region87: #{tpu_custom_call.1} parent=5 // pred_region
        %s1233 = ssub.s32 %s24, 2
        // Predicated region
        $region89: #{tpu_custom_call.1} parent=87 // pred_check
          %p1234 = pneg %p413
        $region90: #{tpu_custom_call.1} parent=87 // pred_check_branch
          %1236 = sbr.rel (%p1234) target = $region92
        $region91: #{tpu_custom_call.1} parent=87 // pred_region
          %s1237 = sand.u32 %s398, 1
          %s1238 = scalar_lea.sflag [#allocation3], %s1237
          %s1239 = sand.u32 %s398, 1
          %s1240 = smul.addr %s1239, 16
          %s1241 = scalar_lea.vmem [#allocation2], %s1240
          %1242 = dma.done %s1238, 256
        $region92: #{tpu_custom_call.1} parent=87 // pred_fallthru
          _
      $region88: #{tpu_custom_call.1} parent=5 // pred_fallthru
        _
    $region6: #{tpu_custom_call.1} parent=1 // loop_footer
      %s28 = sadd.s32 1, %s24
    $region7: #{tpu_custom_call.1} parent=1 // loop_footer_branch
      %23 = sbr.rel target = $region3
    $region8: #{tpu_custom_call.1} parent=1 // loop_exit
      _
    %1243 = vsyncpa [#allocation3], 1
    %s1244 = scalar_lea.sflag [#allocation3], 1
    %1245 = vsyncpa %s1244, 1

</llo_original>
